<compile_context>
chip_gen: v7x
topology: tpu7x:2x2x1
jax: 0.10.0
libtpu: 0.0.40
codegen_flags: <defaults>
</compile_context>

<pallas_src>
import math
import numpy as np
import jax
import jax.numpy as jnp
from jax import lax
from jax.experimental import pallas as pl
from jax.experimental.pallas import tpu as pltpu


def _make_kernel(B, L, C, Cc, K, dilation, padding, use_im2col, matmul_dtype):
    """Kernel processing a (B, L, ...) block per grid step. All statics closed over."""
    R = B * L
    inv_sqrt_d = np.float32(1.0 / math.sqrt(C))
    log_valid = np.float32(np.log(1.0 + 1e-6))    # bias on valid taps (matches torch.log(mask+1e-6))
    log_invalid = np.float32(np.log(1e-6))        # bias on masked taps

    # Tap j reads row (l + j*dilation - padding); rows that would fall outside
    # [0, L) are exactly the rows the attention mask zeroes, so a block-wide
    # rotation (which wraps into the neighbouring example) + mask reproduces
    # the zero padding of F.pad without materializing padded copies.
    shifts = [(padding - j * dilation) % R for j in range(K)]            # roll amounts (>= 0)
    bounds = [(padding - j * dilation, L + padding - j * dilation) for j in range(K)]
    full_tap = [lo <= 0 and hi >= L for lo, hi in bounds]                # mask == all-ones

    def kernel(x_ref, xc_ref, wqkvx_ref, wqkc_ref, bqkv_ref,
               wc_ref, bc_ref, wf1_ref, bf1_ref, wf2_ref, bf2_ref, out_ref):
        # Whole-block loads; collapsing (B, L) -> B*L keeps the lane dim untouched.
        x_f32 = x_ref[...].astype(jnp.float32).reshape(R, C)
        xc_f32 = xc_ref[...].astype(jnp.float32).reshape(R, Cc)
        x_mm = x_f32.astype(matmul_dtype)
        xc_mm = xc_f32.astype(matmul_dtype)

        # Per-row position within its example, for the tap validity masks.
        l_ids = lax.broadcasted_iota(jnp.int32, (B, L, 1), 1).reshape(R, 1)
        valid = [None if full_tap[j]
                 else jnp.logical_and(l_ids >= bounds[j][0], l_ids < bounds[j][1])
                 for j in range(K)]

        def tap(a, j):             # rotate rows; wrapped rows handled by masks
            s = shifts[j]
            return a if s == 0 else pltpu.roll(a, shift=s, axis=0)

        def masked_tap(a, j):      # zero-padded tap (matches F.pad semantics), f32 in / f32 out
            t = tap(a, j)
            return t if valid[j] is None else jnp.where(valid[j], t, 0.0)

        # ---- fused q/k/v 1x1 projections (bf16 MXU inputs, f32 accumulation) ----
        qkv = jnp.dot(x_mm, wqkvx_ref[...], preferred_element_type=jnp.float32)
        qkv = qkv + bqkv_ref[...]                                        # (R, 3C)
        qk_c = jnp.dot(xc_mm, wqkc_ref[...], preferred_element_type=jnp.float32)
        q = qkv[:, 0:C] + qk_c[:, 0:C]
        k = qkv[:, C:2 * C] + qk_c[:, C:2 * C]
        v = qkv[:, 2 * C:3 * C]

        # ---- local dilated attention (f32, vectorized over the whole block) ----
        scores = []
        for j in range(K):
            s_j = jnp.sum(q * masked_tap(k, j), axis=-1, keepdims=True) * inv_sqrt_d
            if valid[j] is None:
                s_j = s_j + log_valid
            else:
                s_j = s_j + jnp.where(valid[j], log_valid, log_invalid)
            scores.append(s_j)                                           # (R, 1)
        m = scores[0]
        for j in range(1, K):
            m = jnp.maximum(m, scores[j])
        es = [jnp.exp(s - m) for s in scores]
        denom = es[0]
        for j in range(1, K):
            denom = denom + es[j]
        inv_denom = pl.reciprocal(denom, approx=True)                    # EUP slot
        r = None
        for j in range(K):
            p_j = es[j] * inv_denom
            if valid[j] is not None:
                p_j = jnp.where(valid[j], p_j, 0.0)
            # p_j is exactly zero on wrapped rows, so v taps need no masking.
            contrib = p_j * tap(v, j)
            r = contrib if r is None else r + contrib                    # (R, C)

        # ---- dilated conv ----
        if use_im2col:
            # Small C: one wide-contraction matmul over the (R, K*C) im2col slab.
            conv_in = jnp.concatenate(
                [masked_tap(x_f32, j).astype(matmul_dtype) for j in range(K)], axis=-1)
            out1 = jnp.dot(conv_in, wc_ref[...].reshape(K * C, C),
                           preferred_element_type=jnp.float32)
        else:
            # C >= 128: per-tap accumulated matmuls (same FLOPs, no K*C slab in VMEM).
            out1 = None
            for j in range(K):
                d_j = jnp.dot(masked_tap(x_f32, j).astype(matmul_dtype), wc_ref[j],
                              preferred_element_type=jnp.float32)
                out1 = d_j if out1 is None else out1 + d_j
        out1 = out1 + bc_ref[...]

        # ---- InstanceNorm1d over length, per example & channel (f32, biased var) ----
        o = (out1 + r).reshape(B, L, C)
        mean = jnp.mean(o, axis=1, keepdims=True)
        cen = o - mean
        var = jnp.mean(cen * cen, axis=1, keepdims=True)
        normed = (cen * lax.rsqrt(var + 1e-5)).reshape(R, C)

        # ---- ffn_block: 1x1 conv -> ReLU -> 1x1 conv ----
        h = jnp.maximum(
            jnp.dot(normed.astype(matmul_dtype), wf1_ref[...],
                    preferred_element_type=jnp.float32) + bf1_ref[...], 0.0)
        ffn = jnp.dot(h.astype(matmul_dtype), wf2_ref[...],
                      preferred_element_type=jnp.float32) + bf2_ref[...]

        # residual + single dense store of the whole block
        out_ref[...] = (x_f32 + ffn).reshape(B, L, C).astype(out_ref.dtype)

    return kernel


def _pick_block_batch(N, L, C, target_rows=512, min_grid_steps=2,
                      act_budget_bytes=20 * 1024 * 1024):
    """Largest divisor B of N such that B*L rows fill the MXU M dim (<= ~512)
    without blowing a conservative per-step VMEM activation budget, while
    keeping >= 2 grid steps so the 'parallel' axis can shard over v7x's 2 TCs."""
    rows_by_vmem = act_budget_bytes // max(1, 14 * C * 4)   # ~14 live (rows, C) f32 temps
    rows_cap = max(L, min(target_rows, rows_by_vmem))
    best = 1
    for b in range(1, N + 1):
        if N % b:
            continue
        if b > 1 and b * L > rows_cap:
            continue
        if b > 1 and N // b < min_grid_steps:
            continue
        best = b
    return best


def _pick_vmem_limit():
    """Generation-aware scoped-VMEM limit: ~half of physical, clamped to 32-100 MiB."""
    try:
        cap = pltpu.get_tpu_info().vmem_capacity_bytes
        return int(min(max(cap // 2, 32 * 1024 * 1024), 100 * 1024 * 1024))
    except Exception:
        return 48 * 1024 * 1024   # safe everywhere: v7x has 64 MiB, v5e/v6e have 128 MiB


def mixed_conv_attention_v2(x, x_cross, params, *, kernel_size, dilation,
                            block_batch=None, matmul_dtype=jnp.bfloat16):
    """x: (N, L, d_model), x_cross: (N, L, d_cross). Returns (N, L, d_model)."""
    Wc, bc, Wq, bq, Wk, bk, Wv, bv, Wf1, bf1, Wf2, bf2 = params
    N, L, C = x.shape
    Cc = x_cross.shape[-1]
    K = kernel_size
    padding = (kernel_size // 2) * dilation

    B = _pick_block_batch(N, L, C) if block_batch is None else block_batch
    assert N % B == 0, "block_batch must divide batch size"
    use_im2col = C < 128   # switch to per-tap matmuls once the contraction dim is MXU-wide

    f32 = jnp.float32
    # Fused projection weights (cast once to the MXU dtype in the wrapper).
    #   x-stream feeds q|k|v -> (C, 3C); cross-stream feeds q|k only -> (Cc, 2C).
    Wqkv_x = jnp.concatenate([Wq[:C], Wk[:C], Wv], axis=-1).astype(matmul_dtype)
    Wqk_c = jnp.concatenate([Wq[C:], Wk[C:]], axis=-1).astype(matmul_dtype)
    bqkv = jnp.concatenate([bq, bk, bv], axis=-1).astype(f32)            # (1, 3C)
    Wc_k = Wc.astype(matmul_dtype)                                       # (K, Cin, Cout)

    kern = _make_kernel(B, L, C, Cc, K, dilation, padding, use_im2col, matmul_dtype)

    full2 = lambda b: (0, 0)
    in_specs = [
        pl.BlockSpec((B, L, C), lambda b: (b, 0, 0)),      # x
        pl.BlockSpec((B, L, Cc), lambda b: (b, 0, 0)),     # x_cross
        pl.BlockSpec((C, 3 * C), full2),                   # fused q|k|v weight (x rows)
        pl.BlockSpec((Cc, 2 * C), full2),                  # fused q|k weight (cross rows)
        pl.BlockSpec((1, 3 * C), full2),                   # fused q|k|v bias
        pl.BlockSpec((K, C, C), lambda b: (0, 0, 0)),      # conv weight (tap, Cin, Cout)
        pl.BlockSpec((1, C), full2),                       # conv bias
        pl.BlockSpec((C, C), full2),                       # Wf1
        pl.BlockSpec((1, C), full2),                       # bf1
        pl.BlockSpec((C, C), full2),                       # Wf2
        pl.BlockSpec((1, C), full2),                       # bf2
    ]

    # VMEM note: constant-index weight blocks are still double-buffered by default;
    # in bf16 at production C this is a few MiB, well inside the limit below.
    # TODO(synk): for production d_model < 128, pad channels to a multiple of 128
    # (lane-dense stores + full MXU N dim); kept unpadded here at the small test size.
    return pl.pallas_call(
        kern,
        out_shape=jax.ShapeDtypeStruct((N, L, C), x.dtype),
        grid=(N // B,),
        in_specs=in_specs,
        out_specs=pl.BlockSpec((B, L, C), lambda b: (b, 0, 0)),
        compiler_params=pltpu.CompilerParams(
            dimension_semantics=("parallel",),
            vmem_limit_bytes=_pick_vmem_limit(),
        ),
    )(x, x_cross, Wqkv_x, Wqk_c, bqkv, Wc_k,
      bc.astype(f32), Wf1.astype(matmul_dtype), bf1.astype(f32),
      Wf2.astype(matmul_dtype), bf2.astype(f32))


def reference(x, x_cross, params, kernel_size, dilation, matmul_dtype=jnp.float32):
    """Pure-JAX (NLC) reference matching the PyTorch module in eval mode.
    matmul_dtype=jnp.bfloat16 mirrors the kernel's MXU input precision."""
    Wc, bc, Wq, bq, Wk, bk, Wv, bv, Wf1, bf1, Wf2, bf2 = params
    N, L, C = x.shape
    K = kernel_size
    padding = (kernel_size // 2) * dilation

    mm = lambda a, w: jnp.dot(a.astype(matmul_dtype), w.astype(matmul_dtype),
                              preferred_element_type=jnp.float32)

    xxc = jnp.concatenate([x, x_cross], axis=-1)
    xq = mm(xxc, Wq) + bq
    xk = mm(xxc, Wk) + bk
    xv = mm(x, Wv) + bv

    pad = lambda a: jnp.pad(a, ((0, 0), (padding, padding), (0, 0)))
    xpad, kpad, vpad = pad(x), pad(xk), pad(xv)

    out1 = bc + sum(mm(xpad[:, j * dilation:j * dilation + L, :], Wc[j]) for j in range(K))

    att = jnp.stack(
        [jnp.sum(xq * kpad[:, j * dilation:j * dilation + L, :], axis=-1) for j in range(K)],
        axis=-1)                                                         # (N, L, K)
    idx = np.arange(L)[:, None] + np.arange(K)[None, :] * dilation
    mask = ((idx >= padding) & (idx < L + padding)).astype(np.float32)
    att = att / math.sqrt(C) + jnp.log(mask + 1e-6)
    att = jax.nn.softmax(att, axis=-1) * mask
    r = sum(att[..., j:j + 1] * vpad[:, j * dilation:j * dilation + L, :] for j in range(K))

    out12 = out1 + r
    mean = jnp.mean(out12, axis=1, keepdims=True)
    var = jnp.mean((out12 - mean) ** 2, axis=1, keepdims=True)
    normed = (out12 - mean) * lax.rsqrt(var + 1e-5)
    ffn = mm(jnp.maximum(mm(normed, Wf1) + bf1, 0.0), Wf2) + bf2
    return x + ffn


if __name__ == "__main__":
    N, L = 4, 16
    d_model, d_cross = 32, 16
    kernel_size, dilation = 3, 2

    key = jax.random.PRNGKey(0)
    keys = jax.random.split(key, 14)
    w = lambda k, shape: (0.1 * jax.random.normal(k, shape)).astype(jnp.float32)

    x = jax.random.normal(keys[0], (N, L, d_model), jnp.float32)
    x_cross = jax.random.normal(keys[1], (N, L, d_cross), jnp.float32)

    # Conv1d weight (Cout, Cin, K) in PyTorch -> stored here as (K, Cin, Cout);
    # 1x1 conv weights stored as (Cin, Cout); biases as (1, Cout).
    Wc = w(keys[2], (kernel_size, d_model, d_model))
    bc = w(keys[3], (1, d_model))
    Wq = w(keys[4], (d_model + d_cross, d_model))
    bq = w(keys[5], (1, d_model))
    Wk = w(keys[6], (d_model + d_cross, d_model))
    bk = w(keys[7], (1, d_model))
    Wv = w(keys[8], (d_model, d_model))
    bv = w(keys[9], (1, d_model))
    Wf1 = w(keys[10], (d_model, d_model))
    bf1 = w(keys[11], (1, d_model))
    Wf2 = w(keys[12], (d_model, d_model))
    bf2 = w(keys[13], (1, d_model))
    params = (Wc, bc, Wq, bq, Wk, bk, Wv, bv, Wf1, bf1, Wf2, bf2)

    out = mixed_conv_attention_v2(x, x_cross, params,
                                  kernel_size=kernel_size, dilation=dilation)
    out = jax.block_until_ready(out)

    # Compare against a reference that uses the same bf16 MXU input precision as
    # the kernel; remaining differences are accumulation order and the EUP
    # approximate reciprocal in the softmax denominator.
    ref = jax.block_until_ready(
        reference(x, x_cross, params, kernel_size, dilation, matmul_dtype=jnp.bfloat16))
    np.testing.assert_allclose(np.asarray(out), np.asarray(ref), rtol=1e-2, atol=1e-2)
    print("KERNEL_OK")
</pallas_src>

<mosaic_0001>
module attributes {stable_mosaic.version = 11 : i64} {
  func.func @kernel(%arg0: i32, %arg1: memref<2x16x32xf32, #tpu.memory_space<vmem>>, %arg2: memref<2x16x16xf32, #tpu.memory_space<vmem>>, %arg3: memref<32x96xbf16, #tpu.memory_space<vmem>>, %arg4: memref<16x64xbf16, #tpu.memory_space<vmem>>, %arg5: memref<1x96xf32, #tpu.memory_space<vmem>>, %arg6: memref<3x32x32xbf16, #tpu.memory_space<vmem>>, %arg7: memref<1x32xf32, #tpu.memory_space<vmem>>, %arg8: memref<32x32xbf16, #tpu.memory_space<vmem>>, %arg9: memref<1x32xf32, #tpu.memory_space<vmem>>, %arg10: memref<32x32xbf16, #tpu.memory_space<vmem>>, %arg11: memref<1x32xf32, #tpu.memory_space<vmem>>, %arg12: memref<2x16x32xf32, #tpu.memory_space<vmem>>) attributes {dimension_semantics = [#tpu.dimension_semantics<parallel>], iteration_bounds = array<i64: 2>, scalar_prefetch = 0 : i64, scratch_operands = 0 : i64, tpu.core_type = #tpu.core_type<tc>, window_params = [{transform_indices = @transform_0, window_bounds = array<i64: 2, 16, 32>}, {transform_indices = @transform_1, window_bounds = array<i64: 2, 16, 16>}, {pipeline_mode = #tpu.pipeline_mode<synchronous>, transform_indices = @transform_2, window_bounds = array<i64: 32, 96>}, {pipeline_mode = #tpu.pipeline_mode<synchronous>, transform_indices = @transform_3, window_bounds = array<i64: 16, 64>}, {pipeline_mode = #tpu.pipeline_mode<synchronous>, transform_indices = @transform_4, window_bounds = array<i64: 1, 96>}, {pipeline_mode = #tpu.pipeline_mode<synchronous>, transform_indices = @transform_5, window_bounds = array<i64: 3, 32, 32>}, {pipeline_mode = #tpu.pipeline_mode<synchronous>, transform_indices = @transform_6, window_bounds = array<i64: 1, 32>}, {pipeline_mode = #tpu.pipeline_mode<synchronous>, transform_indices = @transform_7, window_bounds = array<i64: 32, 32>}, {pipeline_mode = #tpu.pipeline_mode<synchronous>, transform_indices = @transform_8, window_bounds = array<i64: 1, 32>}, {pipeline_mode = #tpu.pipeline_mode<synchronous>, transform_indices = @transform_9, window_bounds = array<i64: 32, 32>}, {pipeline_mode = #tpu.pipeline_mode<synchronous>, transform_indices = @transform_10, window_bounds = array<i64: 1, 32>}, {transform_indices = @transform_11, window_bounds = array<i64: 2, 16, 32>}]} {
    %c0 = arith.constant 0 : index
    %c0_0 = arith.constant 0 : index
    %c0_1 = arith.constant 0 : index
    %0 = vector.load %arg1[%c0, %c0_0, %c0_1] : memref<2x16x32xf32, #tpu.memory_space<vmem>>, vector<2x16x32xf32>
    %1 = vector.shape_cast %0 : vector<2x16x32xf32> to vector<32x32xf32>
    %c0_2 = arith.constant 0 : index
    %c0_3 = arith.constant 0 : index
    %c0_4 = arith.constant 0 : index
    %2 = vector.load %arg2[%c0_2, %c0_3, %c0_4] : memref<2x16x16xf32, #tpu.memory_space<vmem>>, vector<2x16x16xf32>
    %3 = vector.shape_cast %2 : vector<2x16x16xf32> to vector<32x16xf32>
    %4 = arith.truncf %1 : vector<32x32xf32> to vector<32x32xbf16>
    %5 = arith.truncf %3 : vector<32x16xf32> to vector<32x16xbf16>
    %6 = tpu.iota {dimensions = array<i32: 1>} : vector<2x16x1xi32>
    %7 = vector.shape_cast %6 : vector<2x16x1xi32> to vector<32x1xi32>
    %c2_i32 = arith.constant 2 : i32
    %8 = vector.broadcast %c2_i32 : i32 to vector<32x1xi32>
    %9 = arith.cmpi sge, %7, %8 : vector<32x1xi32>
    %c18_i32 = arith.constant 18 : i32
    %10 = vector.broadcast %c18_i32 : i32 to vector<32x1xi32>
    %11 = arith.cmpi slt, %7, %10 : vector<32x1xi32>
    %12 = arith.andi %9, %11 : vector<32x1xi1>
    %c-2_i32 = arith.constant -2 : i32
    %13 = vector.broadcast %c-2_i32 : i32 to vector<32x1xi32>
    %14 = arith.cmpi sge, %7, %13 : vector<32x1xi32>
    %c14_i32 = arith.constant 14 : i32
    %15 = vector.broadcast %c14_i32 : i32 to vector<32x1xi32>
    %16 = arith.cmpi slt, %7, %15 : vector<32x1xi32>
    %17 = arith.andi %14, %16 : vector<32x1xi1>
    %c0_5 = arith.constant 0 : index
    %c0_6 = arith.constant 0 : index
    %18 = vector.load %arg3[%c0_5, %c0_6] : memref<32x96xbf16, #tpu.memory_space<vmem>>, vector<32x96xbf16>
    %cst = arith.constant dense<0.000000e+00> : vector<32x96xf32>
    %19 = tpu.matmul %4, %18, %cst {dimension_numbers = #tpu.dot_dimension_numbers<[1], [0], [0], [1], [0, 0, 1, 1], [], []>} : vector<32x32xbf16>, vector<32x96xbf16>, vector<32x96xf32> -> vector<32x96xf32>
    %c0_7 = arith.constant 0 : index
    %c0_8 = arith.constant 0 : index
    %20 = vector.load %arg5[%c0_7, %c0_8] : memref<1x96xf32, #tpu.memory_space<vmem>>, vector<1x96xf32>
    %21 = vector.broadcast %20 : vector<1x96xf32> to vector<32x96xf32>
    %22 = arith.addf %19, %21 : vector<32x96xf32>
    %c0_9 = arith.constant 0 : index
    %c0_10 = arith.constant 0 : index
    %23 = vector.load %arg4[%c0_9, %c0_10] : memref<16x64xbf16, #tpu.memory_space<vmem>>, vector<16x64xbf16>
    %cst_11 = arith.constant dense<0.000000e+00> : vector<32x64xf32>
    %24 = tpu.matmul %5, %23, %cst_11 {dimension_numbers = #tpu.dot_dimension_numbers<[1], [0], [0], [1], [0, 0, 1, 1], [], []>} : vector<32x16xbf16>, vector<16x64xbf16>, vector<32x64xf32> -> vector<32x64xf32>
    %25 = vector.extract_strided_slice %22 {offsets = [0, 0], sizes = [32, 32], strides = [1, 1]} : vector<32x96xf32> to vector<32x32xf32>
    %26 = vector.extract_strided_slice %24 {offsets = [0, 0], sizes = [32, 32], strides = [1, 1]} : vector<32x64xf32> to vector<32x32xf32>
    %27 = arith.addf %25, %26 : vector<32x32xf32>
    %28 = vector.extract_strided_slice %22 {offsets = [0, 32], sizes = [32, 32], strides = [1, 1]} : vector<32x96xf32> to vector<32x32xf32>
    %29 = vector.extract_strided_slice %24 {offsets = [0, 32], sizes = [32, 32], strides = [1, 1]} : vector<32x64xf32> to vector<32x32xf32>
    %30 = arith.addf %28, %29 : vector<32x32xf32>
    %31 = vector.extract_strided_slice %22 {offsets = [0, 64], sizes = [32, 32], strides = [1, 1]} : vector<32x96xf32> to vector<32x32xf32>
    %c2_i32_12 = arith.constant 2 : i32
    %32 = tpu.dynamic_rotate %30 by %c2_i32_12 dim 0 : vector<32x32xf32>, i32 -> vector<32x32xf32>
    %cst_13 = arith.constant 0.000000e+00 : f32
    %33 = vector.shape_cast %12 : vector<32x1xi1> to vector<32x1xi1>
    %34 = vector.broadcast %33 : vector<32x1xi1> to vector<32x32xi1>
    %35 = vector.broadcast %cst_13 : f32 to vector<32x32xf32>
    %36 = arith.select %34, %32, %35 : vector<32x32xi1>, vector<32x32xf32>
    %37 = arith.mulf %27, %36 : vector<32x32xf32>
    %cst_14 = arith.constant dense<0.000000e+00> : vector<32xf32>
    %38 = vector.multi_reduction <add>, %37, %cst_14 [1] : vector<32x32xf32> to vector<32xf32>
    %39 = vector.shape_cast %38 : vector<32xf32> to vector<32x1xf32>
    %cst_15 = arith.constant 0.176776692 : f32
    %40 = vector.broadcast %cst_15 : f32 to vector<32x1xf32>
    %41 = arith.mulf %39, %40 : vector<32x1xf32>
    %cst_16 = arith.constant 9.99999543E-7 : f32
    %cst_17 = arith.constant -13.8155107 : f32
    %42 = vector.broadcast %cst_16 : f32 to vector<32x1xf32>
    %43 = vector.broadcast %cst_17 : f32 to vector<32x1xf32>
    %44 = arith.select %12, %42, %43 : vector<32x1xi1>, vector<32x1xf32>
    %45 = arith.addf %41, %44 : vector<32x1xf32>
    %46 = arith.mulf %27, %30 : vector<32x32xf32>
    %cst_18 = arith.constant dense<0.000000e+00> : vector<32xf32>
    %47 = vector.multi_reduction <add>, %46, %cst_18 [1] : vector<32x32xf32> to vector<32xf32>
    %48 = vector.shape_cast %47 : vector<32xf32> to vector<32x1xf32>
    %cst_19 = arith.constant 0.176776692 : f32
    %49 = vector.broadcast %cst_19 : f32 to vector<32x1xf32>
    %50 = arith.mulf %48, %49 : vector<32x1xf32>
    %cst_20 = arith.constant 9.99999543E-7 : f32
    %51 = vector.broadcast %cst_20 : f32 to vector<32x1xf32>
    %52 = arith.addf %50, %51 : vector<32x1xf32>
    %c30_i32 = arith.constant 30 : i32
    %53 = tpu.dynamic_rotate %30 by %c30_i32 dim 0 : vector<32x32xf32>, i32 -> vector<32x32xf32>
    %cst_21 = arith.constant 0.000000e+00 : f32
    %54 = vector.shape_cast %17 : vector<32x1xi1> to vector<32x1xi1>
    %55 = vector.broadcast %54 : vector<32x1xi1> to vector<32x32xi1>
    %56 = vector.broadcast %cst_21 : f32 to vector<32x32xf32>
    %57 = arith.select %55, %53, %56 : vector<32x32xi1>, vector<32x32xf32>
    %58 = arith.mulf %27, %57 : vector<32x32xf32>
    %cst_22 = arith.constant dense<0.000000e+00> : vector<32xf32>
    %59 = vector.multi_reduction <add>, %58, %cst_22 [1] : vector<32x32xf32> to vector<32xf32>
    %60 = vector.shape_cast %59 : vector<32xf32> to vector<32x1xf32>
    %cst_23 = arith.constant 0.176776692 : f32
    %61 = vector.broadcast %cst_23 : f32 to vector<32x1xf32>
    %62 = arith.mulf %60, %61 : vector<32x1xf32>
    %cst_24 = arith.constant 9.99999543E-7 : f32
    %cst_25 = arith.constant -13.8155107 : f32
    %63 = vector.broadcast %cst_24 : f32 to vector<32x1xf32>
    %64 = vector.broadcast %cst_25 : f32 to vector<32x1xf32>
    %65 = arith.select %17, %63, %64 : vector<32x1xi1>, vector<32x1xf32>
    %66 = arith.addf %62, %65 : vector<32x1xf32>
    %67 = arith.maximumf %45, %52 : vector<32x1xf32>
    %68 = arith.maximumf %67, %66 : vector<32x1xf32>
    %69 = arith.subf %45, %68 : vector<32x1xf32>
    %70 = math.exp %69 : vector<32x1xf32>
    %71 = arith.subf %52, %68 : vector<32x1xf32>
    %72 = math.exp %71 : vector<32x1xf32>
    %73 = arith.subf %66, %68 : vector<32x1xf32>
    %74 = math.exp %73 : vector<32x1xf32>
    %75 = arith.addf %70, %72 : vector<32x1xf32>
    %76 = arith.addf %75, %74 : vector<32x1xf32>
    %77 = tpu.reciprocal %76 {approx = true} : vector<32x1xf32> -> vector<32x1xf32>
    %78 = arith.mulf %70, %77 : vector<32x1xf32>
    %cst_26 = arith.constant 0.000000e+00 : f32
    %79 = vector.broadcast %cst_26 : f32 to vector<32x1xf32>
    %80 = arith.select %12, %78, %79 : vector<32x1xi1>, vector<32x1xf32>
    %c2_i32_27 = arith.constant 2 : i32
    %81 = tpu.dynamic_rotate %31 by %c2_i32_27 dim 0 : vector<32x32xf32>, i32 -> vector<32x32xf32>
    %82 = vector.broadcast %80 : vector<32x1xf32> to vector<32x32xf32>
    %83 = arith.mulf %82, %81 : vector<32x32xf32>
    %84 = arith.mulf %72, %77 : vector<32x1xf32>
    %85 = vector.broadcast %84 : vector<32x1xf32> to vector<32x32xf32>
    %86 = arith.mulf %85, %31 : vector<32x32xf32>
    %87 = arith.addf %83, %86 : vector<32x32xf32>
    %88 = arith.mulf %74, %77 : vector<32x1xf32>
    %cst_28 = arith.constant 0.000000e+00 : f32
    %89 = vector.broadcast %cst_28 : f32 to vector<32x1xf32>
    %90 = arith.select %17, %88, %89 : vector<32x1xi1>, vector<32x1xf32>
    %c30_i32_29 = arith.constant 30 : i32
    %91 = tpu.dynamic_rotate %31 by %c30_i32_29 dim 0 : vector<32x32xf32>, i32 -> vector<32x32xf32>
    %92 = vector.broadcast %90 : vector<32x1xf32> to vector<32x32xf32>
    %93 = arith.mulf %92, %91 : vector<32x32xf32>
    %94 = arith.addf %87, %93 : vector<32x32xf32>
    %c2_i32_30 = arith.constant 2 : i32
    %95 = tpu.dynamic_rotate %1 by %c2_i32_30 dim 0 : vector<32x32xf32>, i32 -> vector<32x32xf32>
    %cst_31 = arith.constant 0.000000e+00 : f32
    %96 = vector.shape_cast %12 : vector<32x1xi1> to vector<32x1xi1>
    %97 = vector.broadcast %96 : vector<32x1xi1> to vector<32x32xi1>
    %98 = vector.broadcast %cst_31 : f32 to vector<32x32xf32>
    %99 = arith.select %97, %95, %98 : vector<32x32xi1>, vector<32x32xf32>
    %100 = arith.truncf %99 : vector<32x32xf32> to vector<32x32xbf16>
    %101 = arith.truncf %1 : vector<32x32xf32> to vector<32x32xbf16>
    %c30_i32_32 = arith.constant 30 : i32
    %102 = tpu.dynamic_rotate %1 by %c30_i32_32 dim 0 : vector<32x32xf32>, i32 -> vector<32x32xf32>
    %cst_33 = arith.constant 0.000000e+00 : f32
    %103 = vector.shape_cast %17 : vector<32x1xi1> to vector<32x1xi1>
    %104 = vector.broadcast %103 : vector<32x1xi1> to vector<32x32xi1>
    %105 = vector.broadcast %cst_33 : f32 to vector<32x32xf32>
    %106 = arith.select %104, %102, %105 : vector<32x32xi1>, vector<32x32xf32>
    %107 = arith.truncf %106 : vector<32x32xf32> to vector<32x32xbf16>
    %108 = tpu.concatenate %100, %101, %107 in 1 : vector<32x32xbf16>, vector<32x32xbf16>, vector<32x32xbf16> -> vector<32x96xbf16>
    %c0_34 = arith.constant 0 : index
    %c0_35 = arith.constant 0 : index
    %c0_36 = arith.constant 0 : index
    %109 = vector.load %arg6[%c0_34, %c0_35, %c0_36] : memref<3x32x32xbf16, #tpu.memory_space<vmem>>, vector<3x32x32xbf16>
    %110 = vector.shape_cast %109 : vector<3x32x32xbf16> to vector<96x32xbf16>
    %cst_37 = arith.constant dense<0.000000e+00> : vector<32x32xf32>
    %111 = tpu.matmul %108, %110, %cst_37 {dimension_numbers = #tpu.dot_dimension_numbers<[1], [0], [0], [1], [0, 0, 1, 1], [], []>} : vector<32x96xbf16>, vector<96x32xbf16>, vector<32x32xf32> -> vector<32x32xf32>
    %c0_38 = arith.constant 0 : index
    %c0_39 = arith.constant 0 : index
    %112 = vector.load %arg7[%c0_38, %c0_39] : memref<1x32xf32, #tpu.memory_space<vmem>>, vector<1x32xf32>
    %113 = vector.broadcast %112 : vector<1x32xf32> to vector<32x32xf32>
    %114 = arith.addf %111, %113 : vector<32x32xf32>
    %115 = arith.addf %114, %94 : vector<32x32xf32>
    %116 = vector.shape_cast %115 : vector<32x32xf32> to vector<2x16x32xf32>
    %cst_40 = arith.constant dense<0.000000e+00> : vector<2x32xf32>
    %117 = vector.multi_reduction <add>, %116, %cst_40 [1] : vector<2x16x32xf32> to vector<2x32xf32>
    %118 = vector.shape_cast %117 : vector<2x32xf32> to vector<2x1x32xf32>
    %cst_41 = arith.constant 1.600000e+01 : f32
    %119 = vector.broadcast %cst_41 : f32 to vector<2x1x32xf32>
    %120 = arith.divf %118, %119 : vector<2x1x32xf32>
    %121 = vector.broadcast %120 : vector<2x1x32xf32> to vector<2x16x32xf32>
    %122 = arith.subf %116, %121 : vector<2x16x32xf32>
    %123 = arith.mulf %122, %122 : vector<2x16x32xf32>
    %cst_42 = arith.constant dense<0.000000e+00> : vector<2x32xf32>
    %124 = vector.multi_reduction <add>, %123, %cst_42 [1] : vector<2x16x32xf32> to vector<2x32xf32>
    %125 = vector.shape_cast %124 : vector<2x32xf32> to vector<2x1x32xf32>
    %cst_43 = arith.constant 1.600000e+01 : f32
    %126 = vector.broadcast %cst_43 : f32 to vector<2x1x32xf32>
    %127 = arith.divf %125, %126 : vector<2x1x32xf32>
    %cst_44 = arith.constant 9.99999974E-6 : f32
    %128 = vector.broadcast %cst_44 : f32 to vector<2x1x32xf32>
    %129 = arith.addf %127, %128 : vector<2x1x32xf32>
    %130 = math.rsqrt %129 : vector<2x1x32xf32>
    %131 = vector.broadcast %130 : vector<2x1x32xf32> to vector<2x16x32xf32>
    %132 = arith.mulf %122, %131 : vector<2x16x32xf32>
    %133 = vector.shape_cast %132 : vector<2x16x32xf32> to vector<32x32xf32>
    %134 = arith.truncf %133 : vector<32x32xf32> to vector<32x32xbf16>
    %c0_45 = arith.constant 0 : index
    %c0_46 = arith.constant 0 : index
    %135 = vector.load %arg8[%c0_45, %c0_46] : memref<32x32xbf16, #tpu.memory_space<vmem>>, vector<32x32xbf16>
    %cst_47 = arith.constant dense<0.000000e+00> : vector<32x32xf32>
    %136 = tpu.matmul %134, %135, %cst_47 {dimension_numbers = #tpu.dot_dimension_numbers<[1], [0], [0], [1], [0, 0, 1, 1], [], []>} : vector<32x32xbf16>, vector<32x32xbf16>, vector<32x32xf32> -> vector<32x32xf32>
    %c0_48 = arith.constant 0 : index
    %c0_49 = arith.constant 0 : index
    %137 = vector.load %arg9[%c0_48, %c0_49] : memref<1x32xf32, #tpu.memory_space<vmem>>, vector<1x32xf32>
    %138 = vector.broadcast %137 : vector<1x32xf32> to vector<32x32xf32>
    %139 = arith.addf %136, %138 : vector<32x32xf32>
    %cst_50 = arith.constant 0.000000e+00 : f32
    %140 = vector.broadcast %cst_50 : f32 to vector<32x32xf32>
    %141 = arith.maximumf %139, %140 : vector<32x32xf32>
    %142 = arith.truncf %141 : vector<32x32xf32> to vector<32x32xbf16>
    %c0_51 = arith.constant 0 : index
    %c0_52 = arith.constant 0 : index
    %143 = vector.load %arg10[%c0_51, %c0_52] : memref<32x32xbf16, #tpu.memory_space<vmem>>, vector<32x32xbf16>
    %cst_53 = arith.constant dense<0.000000e+00> : vector<32x32xf32>
    %144 = tpu.matmul %142, %143, %cst_53 {dimension_numbers = #tpu.dot_dimension_numbers<[1], [0], [0], [1], [0, 0, 1, 1], [], []>} : vector<32x32xbf16>, vector<32x32xbf16>, vector<32x32xf32> -> vector<32x32xf32>
    %c0_54 = arith.constant 0 : index
    %c0_55 = arith.constant 0 : index
    %145 = vector.load %arg11[%c0_54, %c0_55] : memref<1x32xf32, #tpu.memory_space<vmem>>, vector<1x32xf32>
    %146 = vector.broadcast %145 : vector<1x32xf32> to vector<32x32xf32>
    %147 = arith.addf %144, %146 : vector<32x32xf32>
    %148 = arith.addf %1, %147 : vector<32x32xf32>
    %149 = vector.shape_cast %148 : vector<32x32xf32> to vector<2x16x32xf32>
    %c0_56 = arith.constant 0 : index
    %c0_57 = arith.constant 0 : index
    %c0_58 = arith.constant 0 : index
    %150 = vector.load %arg12[%c0_56, %c0_57, %c0_58] : memref<2x16x32xf32, #tpu.memory_space<vmem>>, vector<2x16x32xf32>
    tpu.vector_store %arg12[%c0_56, %c0_57, %c0_58], %149 {strides = array<i32>} : memref<2x16x32xf32, #tpu.memory_space<vmem>>, vector<2x16x32xf32>,
    return
  }
  func.func @transform_0(%arg0: i32) -> (i32, i32, i32) {
    %c0_i32 = arith.constant 0 : i32
    %c0_i32_0 = arith.constant 0 : i32
    %c0_i32_1 = arith.constant 0 : i32
    return %arg0, %c0_i32, %c0_i32_0 : i32, i32, i32
  }
  func.func @transform_1(%arg0: i32) -> (i32, i32, i32) {
    %c0_i32 = arith.constant 0 : i32
    %c0_i32_0 = arith.constant 0 : i32
    %c0_i32_1 = arith.constant 0 : i32
    return %arg0, %c0_i32, %c0_i32_0 : i32, i32, i32
  }
  func.func @transform_2(%arg0: i32) -> (i32, i32) {
    %c0_i32 = arith.constant 0 : i32
    %c0_i32_0 = arith.constant 0 : i32
    %c0_i32_1 = arith.constant 0 : i32
    return %c0_i32, %c0_i32_0 : i32, i32
  }
  func.func @transform_3(%arg0: i32) -> (i32, i32) {
    %c0_i32 = arith.constant 0 : i32
    %c0_i32_0 = arith.constant 0 : i32
    %c0_i32_1 = arith.constant 0 : i32
    return %c0_i32, %c0_i32_0 : i32, i32
  }
  func.func @transform_4(%arg0: i32) -> (i32, i32) {
    %c0_i32 = arith.constant 0 : i32
    %c0_i32_0 = arith.constant 0 : i32
    %c0_i32_1 = arith.constant 0 : i32
    return %c0_i32, %c0_i32_0 : i32, i32
  }
  func.func @transform_5(%arg0: i32) -> (i32, i32, i32) {
    %c0_i32 = arith.constant 0 : i32
    %c0_i32_0 = arith.constant 0 : i32
    %c0_i32_1 = arith.constant 0 : i32
    %c0_i32_2 = arith.constant 0 : i32
    return %c0_i32, %c0_i32_0, %c0_i32_1 : i32, i32, i32
  }
  func.func @transform_6(%arg0: i32) -> (i32, i32) {
    %c0_i32 = arith.constant 0 : i32
    %c0_i32_0 = arith.constant 0 : i32
    %c0_i32_1 = arith.constant 0 : i32
    return %c0_i32, %c0_i32_0 : i32, i32
  }
  func.func @transform_7(%arg0: i32) -> (i32, i32) {
    %c0_i32 = arith.constant 0 : i32
    %c0_i32_0 = arith.constant 0 : i32
    %c0_i32_1 = arith.constant 0 : i32
    return %c0_i32, %c0_i32_0 : i32, i32
  }
  func.func @transform_8(%arg0: i32) -> (i32, i32) {
    %c0_i32 = arith.constant 0 : i32
    %c0_i32_0 = arith.constant 0 : i32
    %c0_i32_1 = arith.constant 0 : i32
    return %c0_i32, %c0_i32_0 : i32, i32
  }
  func.func @transform_9(%arg0: i32) -> (i32, i32) {
    %c0_i32 = arith.constant 0 : i32
    %c0_i32_0 = arith.constant 0 : i32
    %c0_i32_1 = arith.constant 0 : i32
    return %c0_i32, %c0_i32_0 : i32, i32
  }
  func.func @transform_10(%arg0: i32) -> (i32, i32) {
    %c0_i32 = arith.constant 0 : i32
    %c0_i32_0 = arith.constant 0 : i32
    %c0_i32_1 = arith.constant 0 : i32
    return %c0_i32, %c0_i32_0 : i32, i32
  }
  func.func @transform_11(%arg0: i32) -> (i32, i32, i32) {
    %c0_i32 = arith.constant 0 : i32
    %c0_i32_0 = arith.constant 0 : i32
    %c0_i32_1 = arith.constant 0 : i32
    return %arg0, %c0_i32, %c0_i32_0 : i32, i32, i32
  }
}

</mosaic_0001>

<llo_original>
// kernel: tpu_custom_call.1
$region0: #{tpu_custom_call.1}
  #allocation0 [shape = 'u32[]', space=smem, size = 0x4, offset = 0x4, fixed_abs, tag = 'smem constant byte address 0x4 - core index']
  #allocation1 [shape = 'u32[144,128]{1,0:T(1,128)}', space=vmem, size = 0x12000, scoped, tag = 'internal scratch']
  %s0 = inlined_call_operand.hbm [shape: f32[4,16,32], index: 0, kind: input, shape index: {}]
  %s1 = inlined_call_operand.hbm [shape: f32[4,16,16], index: 1, kind: input, shape index: {}]
  %s2 = inlined_call_operand.hbm [shape: bf16[32,96], index: 2, kind: input, shape index: {}]
  %s3 = inlined_call_operand.hbm [shape: bf16[16,64], index: 3, kind: input, shape index: {}]
  %s4 = inlined_call_operand.vmem [shape: f32[1,96], index: 4, kind: input, shape index: {}]
  %s5 = inlined_call_operand.hbm [shape: bf16[3,32,32], index: 5, kind: input, shape index: {}]
  %s6 = inlined_call_operand.vmem [shape: f32[1,32], index: 6, kind: input, shape index: {}]
  %s7 = inlined_call_operand.vmem [shape: bf16[32,32], index: 7, kind: input, shape index: {}]
  %s8 = inlined_call_operand.hbm [shape: f32[1,32], index: 8, kind: input, shape index: {}]
  %s9 = inlined_call_operand.vmem [shape: bf16[32,32], index: 9, kind: input, shape index: {}]
  %s10 = inlined_call_operand.vmem [shape: f32[1,32], index: 10, kind: input, shape index: {}]
  %s11 = inlined_call_operand.hbm [shape: f32[4,16,32], index: 11, kind: output, shape index: {}]
  %s12 = sld [smem:[#allocation0]]
  $region101: #{tpu_custom_call.1} parent=0
    _
  %s14 = ssub.s32 1, %s12
  %s15 = scalar_select 0, %s14, %s12
  $region1: #{tpu_custom_call.1} parent=0
    #allocation2 [shape = 'u8[32768]{0}', space=vmem, size = 0x8000, scoped, tag = 'input window, operand 0']
    #allocation3 [shape = 's32[2]{0}', space=sflag, size = 0x8, scoped, tag = 'scoped memory for tpu_custom_call.1']
    #allocation4 [shape = 's32[2]{0}', space=sflag, size = 0x8, scoped, tag = 'scoped memory for tpu_custom_call.1']
    #allocation5 [shape = 'u8[32768]{0}', space=vmem, size = 0x8000, scoped, tag = 'input window, operand 1']
    #allocation6 [shape = 's32[2]{0}', space=sflag, size = 0x8, scoped, tag = 'scoped memory for tpu_custom_call.1']
    #allocation7 [shape = 'u8[8192]{0}', space=vmem, size = 0x2000, scoped, tag = 'input window, operand 2, single buffered']
    #allocation8 [shape = 'u8[4096]{0}', space=vmem, size = 0x1000, scoped, tag = 'input window, operand 3, single buffered']
    #allocation9 [shape = 's32[1]{0}', space=sflag, size = 0x4, scoped, tag = 'scoped memory for tpu_custom_call.1']
    #allocation10 [shape = 'u8[24576]{0}', space=vmem, size = 0x6000, scoped, tag = 'input window, operand 5, single buffered']
    #allocation11 [shape = 'u8[512]{0}', space=vmem, size = 0x400, scoped, tag = 'input window, operand 8, single buffered']
    #allocation12 [shape = 's32[1]{0}', space=sflag, size = 0x4, scoped, tag = 'scoped memory for tpu_custom_call.1']
    #allocation13 [shape = 'u8[32768]{0}', space=vmem, size = 0x8000, scoped, tag = 'output window, operand 0']
    %16 = vsyncpa [#allocation3], 0
    %s17 = scalar_lea.sflag [#allocation3], 1
    %18 = vsyncpa %s17, 0
    %19 = vsyncpa [#allocation6], 0
    %s20 = scalar_lea.sflag [#allocation6], 1
    %21 = vsyncpa %s20, 0
    %22 = vsyncpa [#allocation9], 0
    %23 = vsyncpa [#allocation12], 0
    %24 = vsyncpa [#allocation4], 0
    %s25 = scalar_lea.sflag [#allocation4], 1
    %26 = vsyncpa %s25, 0
    loop: start=0, step=1, limit=4
    $region2: #{tpu_custom_call.1} parent=1 // loop_pre_header
      _
    $region3: #{tpu_custom_call.1} parent=1 // loop_header
      %s28 = sphi 0, %s32
      %p29 = scmp.ge.s32.totalorder %s28, 4
      %s38 = sphi 0, %s40
      %s41 = sphi 0, %s38
      %s42 = sphi 0, %s41
      %s58 = sphi 0, %s42
      %s64 = sphi 0, %s66
      %s67 = sphi 0, %s64
      %s68 = sphi 0, %s67
      %s84 = sphi 0, %s68
      %s88 = sphi 0, %s88
      %s90 = sphi 0, %s88
      %s91 = sphi 0, %s90
      %s105 = sphi 0, %s91
      %s109 = sphi 0, %s109
      %s111 = sphi 0, %s109
      %s112 = sphi 0, %s111
      %s126 = sphi 0, %s112
      %s130 = sphi 0, %s130
      %s132 = sphi 0, %s130
      %s133 = sphi 0, %s132
      %s147 = sphi 0, %s133
      %s151 = sphi 0, %s151
      %s153 = sphi 0, %s151
      %s154 = sphi 0, %s153
      %s168 = sphi 0, %s154
      %s172 = sphi 0, %s172
      %s174 = sphi 0, %s172
      %s175 = sphi 0, %s174
      %s189 = sphi 0, %s175
      %s193 = sphi 0, %s193
      %s195 = sphi 0, %s193
      %s196 = sphi 0, %s195
      %s210 = sphi 0, %s196
      %s214 = sphi 0, %s214
      %s216 = sphi 0, %s214
      %s217 = sphi 0, %s216
      %s231 = sphi 0, %s217
      %s235 = sphi 0, %s235
      %s237 = sphi 0, %s235
      %s238 = sphi 0, %s237
      %s252 = sphi 0, %s238
      %s256 = sphi 0, %s256
      %s258 = sphi 0, %s256
      %s259 = sphi 0, %s258
      %s273 = sphi 0, %s259
      %s279 = sphi 0, %s281
      %s282 = sphi 0, %s279
      %s283 = sphi 0, %s282
      %s299 = sphi 0, %s283
    $region4: #{tpu_custom_call.1} parent=1 // loop_header_branch
      %31 = sbr.rel (%p29) target = $region8
    $region5: #{tpu_custom_call.1} parent=1 // loop_body
      %s33 = ssub.s32 %s28, 1
      %s34 = ssub.s32 %s28, 2
      %s35 = sadd.s32 %s28, 1
      %s36 = ssub.s32 %s28, %s35
      %p37 = scmp.eq.s32.totalorder %s36, 0
      %s39 = sadd.s32 %s38, 1
      %s40 = scalar_select %p37, %s38, %s39
      %p43 = pneg %p37
      %p44 = scmp.eq.s32.totalorder %s28, 1
      %p45 = por %p43, %p44
      %p46 = scmp.ne.s32.totalorder %s38, %s41
      %p47 = scmp.eq.s32.totalorder %s28, 0
      %p48 = por %p46, %p47
      %p49 = scmp.ne.s32.totalorder %s38, %s41
      %p50 = scmp.eq.s32.totalorder %s33, 1
      %p51 = por %p49, %p50
      %p52 = scmp.ne.s32.totalorder %s41, %s42
      %p53 = scmp.eq.s32.totalorder %s33, 0
      %p54 = por %p52, %p53
      %p55 = scmp.ne.s32.totalorder %s41, %s42
      %p56 = scmp.eq.s32.totalorder %s34, 1
      %p57 = por %p55, %p56
      %p59 = scmp.ne.s32.totalorder %s42, %s58
      %p60 = scmp.eq.s32.totalorder %s34, 0
      %p61 = por %p59, %p60
      %s62 = ssub.s32 %s28, %s35
      %p63 = scmp.eq.s32.totalorder %s62, 0
      %s65 = sadd.s32 %s64, 1
      %s66 = scalar_select %p63, %s64, %s65
      %p69 = pneg %p63
      %p70 = scmp.eq.s32.totalorder %s28, 1
      %p71 = por %p69, %p70
      %p72 = scmp.ne.s32.totalorder %s64, %s67
      %p73 = scmp.eq.s32.totalorder %s28, 0
      %p74 = por %p72, %p73
      %p75 = scmp.ne.s32.totalorder %s64, %s67
      %p76 = scmp.eq.s32.totalorder %s33, 1
      %p77 = por %p75, %p76
      %p78 = scmp.ne.s32.totalorder %s67, %s68
      %p79 = scmp.eq.s32.totalorder %s33, 0
      %p80 = por %p78, %p79
      %p81 = scmp.ne.s32.totalorder %s67, %s68
      %p82 = scmp.eq.s32.totalorder %s34, 1
      %p83 = por %p81, %p82
      %p85 = scmp.ne.s32.totalorder %s68, %s84
      %p86 = scmp.eq.s32.totalorder %s34, 0
      %p87 = por %p85, %p86
      %s89 = sadd.s32 %s88, 1
      %p92 = scmp.eq.s32.totalorder %s28, 1
      %p93 = scmp.ne.s32.totalorder %s88, %s90
      %p94 = scmp.eq.s32.totalorder %s28, 0
      %p95 = por %p93, %p94
      %p96 = scmp.ne.s32.totalorder %s88, %s90
      %p97 = scmp.eq.s32.totalorder %s33, 1
      %p98 = por %p96, %p97
      %p99 = scmp.ne.s32.totalorder %s90, %s91
      %p100 = scmp.eq.s32.totalorder %s33, 0
      %p101 = por %p99, %p100
      %p102 = scmp.ne.s32.totalorder %s90, %s91
      %p103 = scmp.eq.s32.totalorder %s34, 1
      %p104 = por %p102, %p103
      %p106 = scmp.ne.s32.totalorder %s91, %s105
      %p107 = scmp.eq.s32.totalorder %s34, 0
      %p108 = por %p106, %p107
      %s110 = sadd.s32 %s109, 1
      %p113 = scmp.eq.s32.totalorder %s28, 1
      %p114 = scmp.ne.s32.totalorder %s109, %s111
      %p115 = scmp.eq.s32.totalorder %s28, 0
      %p116 = por %p114, %p115
      %p117 = scmp.ne.s32.totalorder %s109, %s111
      %p118 = scmp.eq.s32.totalorder %s33, 1
      %p119 = por %p117, %p118
      %p120 = scmp.ne.s32.totalorder %s111, %s112
      %p121 = scmp.eq.s32.totalorder %s33, 0
      %p122 = por %p120, %p121
      %p123 = scmp.ne.s32.totalorder %s111, %s112
      %p124 = scmp.eq.s32.totalorder %s34, 1
      %p125 = por %p123, %p124
      %p127 = scmp.ne.s32.totalorder %s112, %s126
      %p128 = scmp.eq.s32.totalorder %s34, 0
      %p129 = por %p127, %p128
      %s131 = sadd.s32 %s130, 1
      %p134 = scmp.eq.s32.totalorder %s28, 1
      %p135 = scmp.ne.s32.totalorder %s130, %s132
      %p136 = scmp.eq.s32.totalorder %s28, 0
      %p137 = por %p135, %p136
      %p138 = scmp.ne.s32.totalorder %s130, %s132
      %p139 = scmp.eq.s32.totalorder %s33, 1
      %p140 = por %p138, %p139
      %p141 = scmp.ne.s32.totalorder %s132, %s133
      %p142 = scmp.eq.s32.totalorder %s33, 0
      %p143 = por %p141, %p142
      %p144 = scmp.ne.s32.totalorder %s132, %s133
      %p145 = scmp.eq.s32.totalorder %s34, 1
      %p146 = por %p144, %p145
      %p148 = scmp.ne.s32.totalorder %s133, %s147
      %p149 = scmp.eq.s32.totalorder %s34, 0
      %p150 = por %p148, %p149
      %s152 = sadd.s32 %s151, 1
      %p155 = scmp.eq.s32.totalorder %s28, 1
      %p156 = scmp.ne.s32.totalorder %s151, %s153
      %p157 = scmp.eq.s32.totalorder %s28, 0
      %p158 = por %p156, %p157
      %p159 = scmp.ne.s32.totalorder %s151, %s153
      %p160 = scmp.eq.s32.totalorder %s33, 1
      %p161 = por %p159, %p160
      %p162 = scmp.ne.s32.totalorder %s153, %s154
      %p163 = scmp.eq.s32.totalorder %s33, 0
      %p164 = por %p162, %p163
      %p165 = scmp.ne.s32.totalorder %s153, %s154
      %p166 = scmp.eq.s32.totalorder %s34, 1
      %p167 = por %p165, %p166
      %p169 = scmp.ne.s32.totalorder %s154, %s168
      %p170 = scmp.eq.s32.totalorder %s34, 0
      %p171 = por %p169, %p170
      %s173 = sadd.s32 %s172, 1
      %p176 = scmp.eq.s32.totalorder %s28, 1
      %p177 = scmp.ne.s32.totalorder %s172, %s174
      %p178 = scmp.eq.s32.totalorder %s28, 0
      %p179 = por %p177, %p178
      %p180 = scmp.ne.s32.totalorder %s172, %s174
      %p181 = scmp.eq.s32.totalorder %s33, 1
      %p182 = por %p180, %p181
      %p183 = scmp.ne.s32.totalorder %s174, %s175
      %p184 = scmp.eq.s32.totalorder %s33, 0
      %p185 = por %p183, %p184
      %p186 = scmp.ne.s32.totalorder %s174, %s175
      %p187 = scmp.eq.s32.totalorder %s34, 1
      %p188 = por %p186, %p187
      %p190 = scmp.ne.s32.totalorder %s175, %s189
      %p191 = scmp.eq.s32.totalorder %s34, 0
      %p192 = por %p190, %p191
      %s194 = sadd.s32 %s193, 1
      %p197 = scmp.eq.s32.totalorder %s28, 1
      %p198 = scmp.ne.s32.totalorder %s193, %s195
      %p199 = scmp.eq.s32.totalorder %s28, 0
      %p200 = por %p198, %p199
      %p201 = scmp.ne.s32.totalorder %s193, %s195
      %p202 = scmp.eq.s32.totalorder %s33, 1
      %p203 = por %p201, %p202
      %p204 = scmp.ne.s32.totalorder %s195, %s196
      %p205 = scmp.eq.s32.totalorder %s33, 0
      %p206 = por %p204, %p205
      %p207 = scmp.ne.s32.totalorder %s195, %s196
      %p208 = scmp.eq.s32.totalorder %s34, 1
      %p209 = por %p207, %p208
      %p211 = scmp.ne.s32.totalorder %s196, %s210
      %p212 = scmp.eq.s32.totalorder %s34, 0
      %p213 = por %p211, %p212
      %s215 = sadd.s32 %s214, 1
      %p218 = scmp.eq.s32.totalorder %s28, 1
      %p219 = scmp.ne.s32.totalorder %s214, %s216
      %p220 = scmp.eq.s32.totalorder %s28, 0
      %p221 = por %p219, %p220
      %p222 = scmp.ne.s32.totalorder %s214, %s216
      %p223 = scmp.eq.s32.totalorder %s33, 1
      %p224 = por %p222, %p223
      %p225 = scmp.ne.s32.totalorder %s216, %s217
      %p226 = scmp.eq.s32.totalorder %s33, 0
      %p227 = por %p225, %p226
      %p228 = scmp.ne.s32.totalorder %s216, %s217
      %p229 = scmp.eq.s32.totalorder %s34, 1
      %p230 = por %p228, %p229
      %p232 = scmp.ne.s32.totalorder %s217, %s231
      %p233 = scmp.eq.s32.totalorder %s34, 0
      %p234 = por %p232, %p233
      %s236 = sadd.s32 %s235, 1
      %p239 = scmp.eq.s32.totalorder %s28, 1
      %p240 = scmp.ne.s32.totalorder %s235, %s237
      %p241 = scmp.eq.s32.totalorder %s28, 0
      %p242 = por %p240, %p241
      %p243 = scmp.ne.s32.totalorder %s235, %s237
      %p244 = scmp.eq.s32.totalorder %s33, 1
      %p245 = por %p243, %p244
      %p246 = scmp.ne.s32.totalorder %s237, %s238
      %p247 = scmp.eq.s32.totalorder %s33, 0
      %p248 = por %p246, %p247
      %p249 = scmp.ne.s32.totalorder %s237, %s238
      %p250 = scmp.eq.s32.totalorder %s34, 1
      %p251 = por %p249, %p250
      %p253 = scmp.ne.s32.totalorder %s238, %s252
      %p254 = scmp.eq.s32.totalorder %s34, 0
      %p255 = por %p253, %p254
      %s257 = sadd.s32 %s256, 1
      %p260 = scmp.eq.s32.totalorder %s28, 1
      %p261 = scmp.ne.s32.totalorder %s256, %s258
      %p262 = scmp.eq.s32.totalorder %s28, 0
      %p263 = por %p261, %p262
      %p264 = scmp.ne.s32.totalorder %s256, %s258
      %p265 = scmp.eq.s32.totalorder %s33, 1
      %p266 = por %p264, %p265
      %p267 = scmp.ne.s32.totalorder %s258, %s259
      %p268 = scmp.eq.s32.totalorder %s33, 0
      %p269 = por %p267, %p268
      %p270 = scmp.ne.s32.totalorder %s258, %s259
      %p271 = scmp.eq.s32.totalorder %s34, 1
      %p272 = por %p270, %p271
      %p274 = scmp.ne.s32.totalorder %s259, %s273
      %p275 = scmp.eq.s32.totalorder %s34, 0
      %p276 = por %p274, %p275
      %s277 = ssub.s32 %s28, %s35
      %p278 = scmp.eq.s32.totalorder %s277, 0
      %s280 = sadd.s32 %s279, 1
      %s281 = scalar_select %p278, %s279, %s280
      %p284 = pneg %p278
      %p285 = scmp.eq.s32.totalorder %s28, 1
      %p286 = por %p284, %p285
      %p287 = scmp.ne.s32.totalorder %s279, %s282
      %p288 = scmp.eq.s32.totalorder %s28, 0
      %p289 = por %p287, %p288
      %p290 = scmp.ne.s32.totalorder %s279, %s282
      %p291 = scmp.eq.s32.totalorder %s33, 1
      %p292 = por %p290, %p291
      %p293 = scmp.ne.s32.totalorder %s282, %s283
      %p294 = scmp.eq.s32.totalorder %s33, 0
      %p295 = por %p293, %p294
      %p296 = scmp.ne.s32.totalorder %s282, %s283
      %p297 = scmp.eq.s32.totalorder %s34, 1
      %p298 = por %p296, %p297
      %p300 = scmp.ne.s32.totalorder %s283, %s299
      %p301 = scmp.eq.s32.totalorder %s34, 0
      %p302 = por %p300, %p301
      %p303 = scmp.le.s32.totalorder 1, %s28
      %p304 = scmp.lt.s32.totalorder %s28, 3
      %p305 = pnand %p303, %p304
      %p306 = pneg %p305
      // Predicated region
      $region9: #{tpu_custom_call.1} parent=5 // pred_check
        _
      $region10: #{tpu_custom_call.1} parent=5 // pred_check_branch
        %308 = sbr.rel (%p305) target = $region12
      $region11: #{tpu_custom_call.1} parent=5 // pred_region
        %s309 = ssub.s32 %s28, 1
        // Predicated region
        $region13: #{tpu_custom_call.1} parent=11 // pred_check
          %p310 = pneg %p101
        $region14: #{tpu_custom_call.1} parent=11 // pred_check_branch
          %312 = sbr.rel (%p310) target = $region16
        $region15: #{tpu_custom_call.1} parent=11 // pred_region
          %s314 = ssub.s32 256, 256
          %315 = vsyncadd [#allocation6], %s314
          %s316 = sshll.u32 [#allocation7], 4
          %s317 = int_to_ptr.vmem [resolvable:$true] %s316
          %322 = dma.hbm_to_vmem [thread:$0]  %s2, 256, %s317, [#allocation6], 64, 64, 4
        $region16: #{tpu_custom_call.1} parent=11 // pred_fallthru
          _
        // Predicated region
        $region17: #{tpu_custom_call.1} parent=11 // pred_check
          %p323 = pneg %p122
        $region18: #{tpu_custom_call.1} parent=11 // pred_check_branch
          %325 = sbr.rel (%p323) target = $region20
        $region19: #{tpu_custom_call.1} parent=11 // pred_region
          %s327 = ssub.s32 128, 128
          %328 = vsyncadd [#allocation9], %s327
          %s329 = sshll.u32 [#allocation8], 4
          %s330 = int_to_ptr.vmem [resolvable:$true] %s329
          %335 = dma.hbm_to_vmem [thread:$0]  %s3, 128, %s330, [#allocation9], 64, 64, 4
        $region20: #{tpu_custom_call.1} parent=11 // pred_fallthru
          _
        // Predicated region
        $region21: #{tpu_custom_call.1} parent=11 // pred_check
          %p336 = pneg %p143
        $region22: #{tpu_custom_call.1} parent=11 // pred_check_branch
          %338 = sbr.rel (%p336) target = $region24
        $region23: #{tpu_custom_call.1} parent=11 // pred_region
          _
        $region24: #{tpu_custom_call.1} parent=11 // pred_fallthru
          _
        // Predicated region
        $region25: #{tpu_custom_call.1} parent=11 // pred_check
          %p339 = pneg %p164
        $region26: #{tpu_custom_call.1} parent=11 // pred_check_branch
          %341 = sbr.rel (%p339) target = $region28
        $region27: #{tpu_custom_call.1} parent=11 // pred_region
          %s343 = ssub.s32 768, 768
          %344 = vsyncadd [#allocation9], %s343
          %s345 = sshll.u32 [#allocation10], 4
          %s346 = int_to_ptr.vmem [resolvable:$true] %s345
          %351 = dma.hbm_to_vmem [thread:$0]  %s5, 768, %s346, [#allocation9], 64, 64, 4
        $region28: #{tpu_custom_call.1} parent=11 // pred_fallthru
          _
        // Predicated region
        $region29: #{tpu_custom_call.1} parent=11 // pred_check
          %p352 = pneg %p185
        $region30: #{tpu_custom_call.1} parent=11 // pred_check_branch
          %354 = sbr.rel (%p352) target = $region32
        $region31: #{tpu_custom_call.1} parent=11 // pred_region
          _
        $region32: #{tpu_custom_call.1} parent=11 // pred_fallthru
          _
        // Predicated region
        $region33: #{tpu_custom_call.1} parent=11 // pred_check
          %p355 = pneg %p206
        $region34: #{tpu_custom_call.1} parent=11 // pred_check_branch
          %357 = sbr.rel (%p355) target = $region36
        $region35: #{tpu_custom_call.1} parent=11 // pred_region
          _
        $region36: #{tpu_custom_call.1} parent=11 // pred_fallthru
          _
        // Predicated region
        $region37: #{tpu_custom_call.1} parent=11 // pred_check
          %p358 = pneg %p227
        $region38: #{tpu_custom_call.1} parent=11 // pred_check_branch
          %360 = sbr.rel (%p358) target = $region40
        $region39: #{tpu_custom_call.1} parent=11 // pred_region
          %s362 = ssub.s32 16, 16
          %363 = vsyncadd [#allocation12], %s362
          %s365 = sshll.u32 [#allocation11], 4
          %s366 = int_to_ptr.vmem [resolvable:$true] %s365
          %368 = dma.hbm_to_vmem [thread:$0]  %s8, 16, %s366, [#allocation12]
        $region40: #{tpu_custom_call.1} parent=11 // pred_fallthru
          _
        // Predicated region
        $region41: #{tpu_custom_call.1} parent=11 // pred_check
          %p369 = pneg %p248
        $region42: #{tpu_custom_call.1} parent=11 // pred_check_branch
          %371 = sbr.rel (%p369) target = $region44
        $region43: #{tpu_custom_call.1} parent=11 // pred_region
          _
        $region44: #{tpu_custom_call.1} parent=11 // pred_fallthru
          _
        // Predicated region
        $region45: #{tpu_custom_call.1} parent=11 // pred_check
          %p372 = pneg %p269
        $region46: #{tpu_custom_call.1} parent=11 // pred_check_branch
          %374 = sbr.rel (%p372) target = $region48
        $region47: #{tpu_custom_call.1} parent=11 // pred_region
          _
        $region48: #{tpu_custom_call.1} parent=11 // pred_fallthru
          _
      $region12: #{tpu_custom_call.1} parent=5 // pred_fallthru
        _
      %p375 = scmp.lt.s32.totalorder %s28, 2
      // Predicated region
      $region49: #{tpu_custom_call.1} parent=5 // pred_check
        %p376 = pneg %p375
      $region50: #{tpu_custom_call.1} parent=5 // pred_check_branch
        %378 = sbr.rel (%p376) target = $region52
      $region51: #{tpu_custom_call.1} parent=5 // pred_region
        // Predicated region
        $region53: #{tpu_custom_call.1} parent=51 // pred_check
          %p379 = pneg %p48
        $region54: #{tpu_custom_call.1} parent=51 // pred_check_branch
          %381 = sbr.rel (%p379) target = $region56
        $region55: #{tpu_custom_call.1} parent=51 // pred_region
          %s382 = sand.u32 %s38, 1
          %s383 = scalar_lea.sflag [#allocation3], %s382
          %s384 = sand.u32 %s38, 1
          %s385 = smul.addr %s384, 32
          %s386 = scalar_lea.vmem [#allocation2], %s385
          %s387 = smul.u32 2, %s28
          %s389 = ssub.s32 512, 512
          %390 = vsyncadd %s383, %s389
          %s391 = smul.addr %s387, 2
          %s392 = smul.addr %s391, 128
          %s393 = scalar_lea.hbm %s0, %s392
          %s394 = sshll.u32 %s386, 4
          %s395 = int_to_ptr.vmem [resolvable:$true] %s394
          %400 = dma.hbm_to_vmem [thread:$0]  %s393, 512, %s395, %s383, 128, 128, 8
        $region56: #{tpu_custom_call.1} parent=51 // pred_fallthru
          _
        // Predicated region
        $region57: #{tpu_custom_call.1} parent=51 // pred_check
          %p401 = pneg %p74
        $region58: #{tpu_custom_call.1} parent=51 // pred_check_branch
          %403 = sbr.rel (%p401) target = $region60
        $region59: #{tpu_custom_call.1} parent=51 // pred_region
          %s404 = sand.u32 %s28, 1
          %s405 = scalar_lea.sflag [#allocation6], %s404
          %s406 = sand.u32 %s64, 1
          %s407 = smul.addr %s406, 32
          %s408 = scalar_lea.vmem [#allocation5], %s407
          %s409 = smul.u32 2, %s28
          %s411 = ssub.s32 512, 512
          %412 = vsyncadd %s405, %s411
          %s413 = smul.addr %s409, 2
          %s414 = smul.addr %s413, 128
          %s415 = scalar_lea.hbm %s1, %s414
          %s416 = sshll.u32 %s408, 4
          %s417 = int_to_ptr.vmem [resolvable:$true] %s416
          %422 = dma.hbm_to_vmem [thread:$0]  %s415, 512, %s417, %s405, 128, 128, 8
        $region60: #{tpu_custom_call.1} parent=51 // pred_fallthru
          _
      $region52: #{tpu_custom_call.1} parent=5 // pred_fallthru
        _
      %p423 = scmp.le.s32.totalorder 1, %s28
      %p424 = scmp.lt.s32.totalorder %s28, 3
      %p425 = pnand %p423, %p424
      %p426 = pneg %p425
      // Predicated region
      $region61: #{tpu_custom_call.1} parent=5 // pred_check
        _
      $region62: #{tpu_custom_call.1} parent=5 // pred_check_branch
        %428 = sbr.rel (%p425) target = $region64
      $region63: #{tpu_custom_call.1} parent=5 // pred_region
        %s429 = ssub.s32 %s28, 1
        %s430 = sand.u32 %s41, 1
        %s431 = scalar_lea.sflag [#allocation3], %s430
        %s432 = sand.u32 %s41, 1
        %s433 = smul.addr %s432, 32
        %s434 = scalar_lea.vmem [#allocation2], %s433
        // Predicated region
        $region65: #{tpu_custom_call.1} parent=63 // pred_check
          %p435 = pneg %p54
        $region66: #{tpu_custom_call.1} parent=63 // pred_check_branch
          %437 = sbr.rel (%p435) target = $region68
        $region67: #{tpu_custom_call.1} parent=63 // pred_region
          %438 = dma.done %s431, 512
        $region68: #{tpu_custom_call.1} parent=63 // pred_fallthru
          _
        %s439 = sand.u32 %s33, 1
        %s440 = scalar_lea.sflag [#allocation6], %s439
        %s441 = sand.u32 %s67, 1
        %s442 = smul.addr %s441, 32
        %s443 = scalar_lea.vmem [#allocation5], %s442
        // Predicated region
        $region69: #{tpu_custom_call.1} parent=63 // pred_check
          %p444 = pneg %p80
        $region70: #{tpu_custom_call.1} parent=63 // pred_check_branch
          %446 = sbr.rel (%p444) target = $region72
        $region71: #{tpu_custom_call.1} parent=63 // pred_region
          %447 = dma.done %s440, 512
        $region72: #{tpu_custom_call.1} parent=63 // pred_fallthru
          _
        // Predicated region
        $region73: #{tpu_custom_call.1} parent=63 // pred_check
          %p448 = pneg %p101
        $region74: #{tpu_custom_call.1} parent=63 // pred_check_branch
          %450 = sbr.rel (%p448) target = $region76
        $region75: #{tpu_custom_call.1} parent=63 // pred_region
          %451 = dma.done [#allocation6], 256
        $region76: #{tpu_custom_call.1} parent=63 // pred_fallthru
          _
        // Predicated region
        $region77: #{tpu_custom_call.1} parent=63 // pred_check
          %p452 = pneg %p122
        $region78: #{tpu_custom_call.1} parent=63 // pred_check_branch
          %454 = sbr.rel (%p452) target = $region80
        $region79: #{tpu_custom_call.1} parent=63 // pred_region
          %455 = dma.done [#allocation9], 128
        $region80: #{tpu_custom_call.1} parent=63 // pred_fallthru
          _
        // Predicated region
        $region81: #{tpu_custom_call.1} parent=63 // pred_check
          %p456 = pneg %p164
        $region82: #{tpu_custom_call.1} parent=63 // pred_check_branch
          %458 = sbr.rel (%p456) target = $region84
        $region83: #{tpu_custom_call.1} parent=63 // pred_region
          %459 = dma.done [#allocation9], 768
        $region84: #{tpu_custom_call.1} parent=63 // pred_fallthru
          _
        // Predicated region
        $region85: #{tpu_custom_call.1} parent=63 // pred_check
          %p460 = pneg %p227
        $region86: #{tpu_custom_call.1} parent=63 // pred_check_branch
          %462 = sbr.rel (%p460) target = $region88
        $region87: #{tpu_custom_call.1} parent=63 // pred_region
          %463 = dma.done [#allocation12], 16
        $region88: #{tpu_custom_call.1} parent=63 // pred_fallthru
          _
        %s464 = sand.u32 %s41, 1
        %s465 = scalar_lea.sflag [#allocation3], %s464
        %s466 = sand.u32 %s41, 1
        %s467 = smul.addr %s466, 32
        %s468 = scalar_lea.vmem [#allocation2], %s467
        %p469 = pneg %p54
        %p470 = pneg %p51
        %s471 = sand.u32 %s33, 1
        %s472 = scalar_lea.sflag [#allocation6], %s471
        %s473 = sand.u32 %s67, 1
        %s474 = smul.addr %s473, 32
        %s475 = scalar_lea.vmem [#allocation5], %s474
        %p476 = pneg %p80
        %p477 = pneg %p77
        %p478 = pneg %p101
        %p479 = pneg %p98
        %p480 = pneg %p122
        %p481 = pneg %p119
        %p482 = pneg %p143
        %p483 = pneg %p140
        %p484 = pneg %p164
        %p485 = pneg %p161
        %p486 = pneg %p185
        %p487 = pneg %p182
        %p488 = pneg %p206
        %p489 = pneg %p203
        %p490 = pneg %p227
        %p491 = pneg %p224
        %p492 = pneg %p248
        %p493 = pneg %p245
        %p494 = pneg %p269
        %p495 = pneg %p266
        %p496 = pneg %p295
        %p497 = pneg %p292
        %s498 = sand.u32 %s282, 1
        %s499 = scalar_lea.sflag [#allocation4], %s498
        %s500 = sand.u32 %s282, 1
        %s501 = smul.addr %s500, 32
        %s502 = scalar_lea.vmem [#allocation13], %s501
        %s503 = smul.u32 2, %s33
        %s504 = smul.u32 2, %s33
        %s505 = smul.u32 2, %s33
        %v507 = vld [vmem:[%s434] sm:$0xff]
        %v508 = vld [vmem:[%s434 + $0x8] sm:$0xff]
        %v509 = vld [vmem:[%s434 + $0x10] sm:$0xff]
        %v510 = vld [vmem:[%s434 + $0x18] sm:$0xff]
        %v511 = vld [vmem:[%s443] sm:$0xff]
        %v512 = vld [vmem:[%s443 + $0x8] sm:$0xff]
        %v513 = vld [vmem:[%s443 + $0x10] sm:$0xff]
        %v514 = vld [vmem:[%s443 + $0x18] sm:$0xff]
        %v515 = vpack.c.bf16 %v508, %v507
        %v516 = vpack.c.bf16 %v510, %v509
        %v517 = vpack.c.bf16 %v512, %v511
        %v518 = vpack.c.bf16 %v514, %v513
        %v519 = vlaneseq
        %v520 = vshrl.u32 %v519, 7
        %v521 = vadd.s32 %v520, 8
        %vm522 = vcmp.ge.s32.totalorder %v520, 2
        %vm523 = vcmp.ge.s32.totalorder %v521, 2
        %vm524 = vcmp.lt.s32.totalorder %v520, 18
        %vm525 = vcmp.lt.s32.totalorder %v521, 18
        %vm526 = vmand %vm522, %vm524
        %vm527 = vmand %vm523, %vm525
        %vm528 = vcmp.ge.s32.totalorder %v520, 4294967294
        %vm529 = vcmp.ge.s32.totalorder %v521, 4294967294
        %vm530 = vcmp.lt.s32.totalorder %v520, 14
        %vm531 = vcmp.lt.s32.totalorder %v521, 14
        %vm532 = vmand %vm528, %vm530
        %vm533 = vmand %vm529, %vm531
        %v534 = vld [vmem:[#allocation7] sm:$0xf]
        %v535 = vld [vmem:[#allocation7 + $0x4] sm:$0xf]
        %v536 = vld [vmem:[#allocation7 + $0x8] sm:$0xf]
        %v537 = vld [vmem:[#allocation7 + $0xc] sm:$0xf]
        %v538 = vld [vmem:[%s4] sm:$0x1]
        %v540 = vlaneseq
        %v541 = vshrl.u32 %v540, 7
        %v542 = vsub.s32 0, %v541
        %v543 = vrot.slane %v538, %v542
        %v549 = vunpack.c.l.b16 %v534
        %v550 = vunpack.c.l.b16 %v535
        %v551 = vunpack.c.l.b16 %v536
        %v552 = vunpack.c.l.b16 %v537
        %v553 = vpack.c.b16 %v550, %v549
        %v554 = vpack.c.b16 %v552, %v551
        %vm557 = vcmask 261120
        %v559 = vsel %vm557, %v515, 0
        %v562 = vsel %vm557, %v516, 0
        %564 = vmatprep.subr.bf16.mxu0 0
        %565 = vmatpush1.bf16.msra.mxu0 %v553
        %566 = vmatprep.subr.bf16.mxu0 0
        %567 = vmatpush1.bf16.msra.mxu0 %v554
        %568 = vmatprep.subr.bf16.mxu0 0
        %569 = vmatpush1.bf16.msra.mxu0 0
        %570 = vmatprep.subr.bf16.mxu0 0
        %571 = vmatpush1.bf16.msra.mxu0 0
        %572 = vmatprep.subr.bf16.mxu0 0
        %573 = vmatpush1.bf16.msra.mxu0 0
        %574 = vmatprep.subr.bf16.mxu0 0
        %575 = vmatpush1.bf16.msra.mxu0 0
        %576 = vmatprep.subr.bf16.mxu0 0
        %577 = vmatpush1.bf16.msra.mxu0 0
        %578 = vmatprep.subr.bf16.mxu0 0
        %579 = vmatpush1.bf16.msra.mxu0 0
        %580 = vmatprep.subr.bf16.mxu0 0
        %581 = vmatpush1.bf16.msra.mxu0 0
        %582 = vmatprep.subr.bf16.mxu0 0
        %583 = vmatpush1.bf16.msra.mxu0 0
        %584 = vmatprep.subr.bf16.mxu0 0
        %585 = vmatpush1.bf16.msra.mxu0 0
        %586 = vmatprep.subr.bf16.mxu0 0
        %587 = vmatpush1.bf16.msra.mxu0 0
        %588 = vmatprep.subr.bf16.mxu0 0
        %589 = vmatpush1.bf16.msra.mxu0 0
        %590 = vmatprep.subr.bf16.mxu0 0
        %591 = vmatpush1.bf16.msra.mxu0 0
        %592 = vmatprep.subr.bf16.mxu0 0
        %593 = vmatpush1.bf16.msra.mxu0 0
        %594 = vmatprep.subr.bf16.mxu0 0
        %595 = vmatpush1.bf16.msra.mxu0 0
        %596 = vmatprep.mubr.bf16.mxu0 0
        %597 = vmatmul.mubr.bf16.gmra.mrb[0].mxu0 %v559
        %v598 = vpop.f32.mrb[0].mxu0
        %v599 = vadd.f32 %v543, %v598
        %v600 = vpop.f32.mrb[0].mxu0
        %v601 = vpop.f32.mrb[0].mxu0
        %v602 = vadd.f32 %v543, %v601
        %v603 = vpop.f32.mrb[0].mxu0
        %604 = vmatprep.mubr.bf16.mxu0 0
        %605 = vmatmul.mubr.bf16.gmra.mrb[0].mxu0 %v562
        %v606 = vpop.f32.mrb[0].mxu0
        %v607 = vadd.f32 %v543, %v606
        %v608 = vpop.f32.mrb[0].mxu0
        %v609 = vpop.f32.mrb[0].mxu0
        %v610 = vadd.f32 %v543, %v609
        %v611 = vpop.f32.mrb[0].mxu0
        %612 = vdwg.mxu0
        %v613 = vld [vmem:[#allocation8] sm:$0xf]
        %v614 = vld [vmem:[#allocation8 + $0x4] sm:$0xf]
        %v617 = vunpack.c.l.b16 %v613
        %v618 = vunpack.c.l.b16 %v614
        %v619 = vpack.c.b16 %v618, %v617
        %vm621 = vcmask 130048
        %v623 = vsel %vm621, %v517, 0
        %v626 = vsel %vm621, %v518, 0
        %628 = vmatprep.subr.bf16.mxu0 0
        %629 = vmatpush1.bf16.msra.mxu0 %v619
        %630 = vmatprep.subr.bf16.mxu0 0
        %631 = vmatpush1.bf16.msra.mxu0 0
        %632 = vmatprep.subr.bf16.mxu0 0
        %633 = vmatpush1.bf16.msra.mxu0 0
        %634 = vmatprep.subr.bf16.mxu0 0
        %635 = vmatpush1.bf16.msra.mxu0 0
        %636 = vmatprep.subr.bf16.mxu0 0
        %637 = vmatpush1.bf16.msra.mxu0 0
        %638 = vmatprep.subr.bf16.mxu0 0
        %639 = vmatpush1.bf16.msra.mxu0 0
        %640 = vmatprep.subr.bf16.mxu0 0
        %641 = vmatpush1.bf16.msra.mxu0 0
        %642 = vmatprep.subr.bf16.mxu0 0
        %643 = vmatpush1.bf16.msra.mxu0 0
        %644 = vmatprep.subr.bf16.mxu0 0
        %645 = vmatpush1.bf16.msra.mxu0 0
        %646 = vmatprep.subr.bf16.mxu0 0
        %647 = vmatpush1.bf16.msra.mxu0 0
        %648 = vmatprep.subr.bf16.mxu0 0
        %649 = vmatpush1.bf16.msra.mxu0 0
        %650 = vmatprep.subr.bf16.mxu0 0
        %651 = vmatpush1.bf16.msra.mxu0 0
        %652 = vmatprep.subr.bf16.mxu0 0
        %653 = vmatpush1.bf16.msra.mxu0 0
        %654 = vmatprep.subr.bf16.mxu0 0
        %655 = vmatpush1.bf16.msra.mxu0 0
        %656 = vmatprep.subr.bf16.mxu0 0
        %657 = vmatpush1.bf16.msra.mxu0 0
        %658 = vmatprep.subr.bf16.mxu0 0
        %659 = vmatpush1.bf16.msra.mxu0 0
        %660 = vmatprep.mubr.bf16.mxu0 0
        %661 = vmatmul.mubr.bf16.gmra.mrb[0].mxu0 %v623
        %v662 = vpop.f32.mrb[0].mxu0
        %v663 = vadd.f32 0.0, %v662
        %v664 = vpop.f32.mrb[0].mxu0
        %v665 = vpop.f32.mrb[0].mxu0
        %v666 = vadd.f32 0.0, %v665
        %v667 = vpop.f32.mrb[0].mxu0
        %668 = vmatprep.mubr.bf16.mxu0 0
        %669 = vmatmul.mubr.bf16.gmra.mrb[0].mxu0 %v626
        %v670 = vpop.f32.mrb[0].mxu0
        %v671 = vadd.f32 0.0, %v670
        %v672 = vpop.f32.mrb[0].mxu0
        %v673 = vpop.f32.mrb[0].mxu0
        %v674 = vadd.f32 0.0, %v673
        %v675 = vpop.f32.mrb[0].mxu0
        %676 = vdwg.mxu0
        %v677 = vadd.f32 %v599, %v663
        %v678 = vadd.f32 %v602, %v666
        %v679 = vadd.f32 %v607, %v671
        %v680 = vadd.f32 %v610, %v674
        %685 = vrot.lane.b32.xlu0 %v677, 96
        %v686 = vpop.permute.xlu0 %685
        %687 = vrot.lane.b32.xlu0 %v678, 96
        %v688 = vpop.permute.xlu0 %687
        %689 = vrot.lane.b32.xlu0 %v679, 96
        %v690 = vpop.permute.xlu0 %689
        %691 = vrot.lane.b32.xlu0 %v680, 96
        %v692 = vpop.permute.xlu0 %691
        %v697 = vrot.slane %v686, 6
        %v698 = vrot.slane %v688, 6
        %v699 = vrot.slane %v690, 6
        %v700 = vrot.slane %v692, 6
        %vm701 = vcmp.lt.s32.totalorder %v520, 2
        %v702 = vsel %vm701, %v699, %v700
        %v703 = vsel %vm701, %v698, %v699
        %v704 = vsel %vm701, %v697, %v698
        %v705 = vsel %vm701, %v700, %v697
        %v706 = vsel %vm526, 1, 0
        %v707 = vsel %vm527, 1, 0
        %vm708 = vcmp.eq.s32.totalorder %v706, 1
        %vm709 = vcmp.eq.s32.totalorder %v707, 1
        %v710 = vsel %vm708, %v705, 0.0
        %v711 = vsel %vm709, %v704, 0.0
        %v712 = vsel %vm708, %v703, 0.0
        %v713 = vsel %vm709, %v702, 0.0
        %v714 = vmul.f32 %v677, %v710
        %v715 = vmul.f32 %v678, %v711
        %v716 = vmul.f32 %v679, %v712
        %v717 = vmul.f32 %v680, %v713
        %v718 = vsel %vm557, %v714, 0.0
        %719 = vadd.xlane.f32.xlu0 %v718
        %v720 = vpop.xlane.xlu0 %719
        %v721 = vsel %vm557, %v715, 0.0
        %722 = vadd.xlane.f32.xlu0 %v721
        %v723 = vpop.xlane.xlu0 %722
        %v724 = vsel %vm557, %v716, 0.0
        %725 = vadd.xlane.f32.xlu0 %v724
        %v726 = vpop.xlane.xlu0 %725
        %v727 = vsel %vm557, %v717, 0.0
        %728 = vadd.xlane.f32.xlu0 %v727
        %v729 = vpop.xlane.xlu0 %728
        %v730 = vmul.f32 %v720, 0.17677669
        %v731 = vmul.f32 %v723, 0.17677669
        %v732 = vmul.f32 %v726, 0.17677669
        %v733 = vmul.f32 %v729, 0.17677669
        %v734 = vsel %vm526, 9.999995e-07, -13.815511
        %v735 = vsel %vm527, 9.999995e-07, -13.815511
        %v736 = vadd.f32 %v730, %v734
        %v737 = vadd.f32 %v731, %v735
        %v738 = vadd.f32 %v732, %v734
        %v739 = vadd.f32 %v733, %v735
        %v740 = vmul.f32 %v677, %v686
        %v741 = vmul.f32 %v678, %v688
        %v742 = vmul.f32 %v679, %v690
        %v743 = vmul.f32 %v680, %v692
        %v744 = vsel %vm557, %v740, 0.0
        %745 = vadd.xlane.f32.xlu0 %v744
        %v746 = vpop.xlane.xlu0 %745
        %v747 = vsel %vm557, %v741, 0.0
        %748 = vadd.xlane.f32.xlu0 %v747
        %v749 = vpop.xlane.xlu0 %748
        %v750 = vsel %vm557, %v742, 0.0
        %751 = vadd.xlane.f32.xlu0 %v750
        %v752 = vpop.xlane.xlu0 %751
        %v753 = vsel %vm557, %v743, 0.0
        %754 = vadd.xlane.f32.xlu0 %v753
        %v755 = vpop.xlane.xlu0 %754
        %v756 = vmul.f32 %v746, 0.17677669
        %v757 = vmul.f32 %v749, 0.17677669
        %v758 = vmul.f32 %v752, 0.17677669
        %v759 = vmul.f32 %v755, 0.17677669
        %v760 = vadd.f32 %v756, 9.999995e-07
        %v761 = vadd.f32 %v757, 9.999995e-07
        %v762 = vadd.f32 %v758, 9.999995e-07
        %v763 = vadd.f32 %v759, 9.999995e-07
        %v764 = vrot.slane %v686, 2
        %v765 = vrot.slane %v688, 2
        %v766 = vrot.slane %v690, 2
        %v767 = vrot.slane %v692, 2
        %vm768 = vcmp.lt.s32.totalorder %v520, 6
        %v769 = vsel %vm768, %v766, %v767
        %v770 = vsel %vm768, %v765, %v766
        %v771 = vsel %vm768, %v764, %v765
        %v772 = vsel %vm768, %v767, %v764
        %v773 = vsel %vm532, 1, 0
        %v774 = vsel %vm533, 1, 0
        %vm775 = vcmp.eq.s32.totalorder %v773, 1
        %vm776 = vcmp.eq.s32.totalorder %v774, 1
        %v777 = vsel %vm775, %v771, 0.0
        %v778 = vsel %vm776, %v770, 0.0
        %v779 = vsel %vm775, %v769, 0.0
        %v780 = vsel %vm776, %v772, 0.0
        %v781 = vmul.f32 %v677, %v777
        %v782 = vmul.f32 %v678, %v778
        %v783 = vmul.f32 %v679, %v779
        %v784 = vmul.f32 %v680, %v780
        %v785 = vsel %vm557, %v781, 0.0
        %786 = vadd.xlane.f32.xlu0 %v785
        %v787 = vpop.xlane.xlu0 %786
        %v788 = vsel %vm557, %v782, 0.0
        %789 = vadd.xlane.f32.xlu0 %v788
        %v790 = vpop.xlane.xlu0 %789
        %v791 = vsel %vm557, %v783, 0.0
        %792 = vadd.xlane.f32.xlu0 %v791
        %v793 = vpop.xlane.xlu0 %792
        %v794 = vsel %vm557, %v784, 0.0
        %795 = vadd.xlane.f32.xlu0 %v794
        %v796 = vpop.xlane.xlu0 %795
        %v797 = vmul.f32 %v787, 0.17677669
        %v798 = vmul.f32 %v790, 0.17677669
        %v799 = vmul.f32 %v793, 0.17677669
        %v800 = vmul.f32 %v796, 0.17677669
        %v801 = vsel %vm532, 9.999995e-07, -13.815511
        %v802 = vsel %vm533, 9.999995e-07, -13.815511
        %v803 = vadd.f32 %v797, %v801
        %v804 = vadd.f32 %v798, %v802
        %v805 = vadd.f32 %v799, %v801
        %v806 = vadd.f32 %v800, %v802
        %v807 = vmax.f32 %v736, %v760
        %v808 = vmax.f32 %v737, %v761
        %v809 = vmax.f32 %v738, %v762
        %v810 = vmax.f32 %v739, %v763
        %v811 = vmax.f32 %v807, %v803
        %v812 = vmax.f32 %v808, %v804
        %v813 = vmax.f32 %v809, %v805
        %v814 = vmax.f32 %v810, %v806
        %v815 = vsub.f32 %v736, %v811
        %v816 = vsub.f32 %v737, %v812
        %v817 = vsub.f32 %v738, %v813
        %v818 = vsub.f32 %v739, %v814
        %v819 = vmul.f32 %v815, 1.442695
        %v820 = vpow.pop %v819
        %v821 = vmul.f32 %v816, 1.442695
        %v822 = vpow.pop %v821
        %v823 = vmul.f32 %v817, 1.442695
        %v824 = vpow.pop %v823
        %v825 = vmul.f32 %v818, 1.442695
        %v826 = vpow.pop %v825
        %v827 = vsub.f32 %v760, %v811
        %v828 = vsub.f32 %v761, %v812
        %v829 = vsub.f32 %v762, %v813
        %v830 = vsub.f32 %v763, %v814
        %v831 = vmul.f32 %v827, 1.442695
        %v832 = vpow.pop %v831
        %v833 = vmul.f32 %v828, 1.442695
        %v834 = vpow.pop %v833
        %v835 = vmul.f32 %v829, 1.442695
        %v836 = vpow.pop %v835
        %v837 = vmul.f32 %v830, 1.442695
        %v838 = vpow.pop %v837
        %v839 = vsub.f32 %v803, %v811
        %v840 = vsub.f32 %v804, %v812
        %v841 = vsub.f32 %v805, %v813
        %v842 = vsub.f32 %v806, %v814
        %v843 = vmul.f32 %v839, 1.442695
        %v844 = vpow.pop %v843
        %v845 = vmul.f32 %v840, 1.442695
        %v846 = vpow.pop %v845
        %v847 = vmul.f32 %v841, 1.442695
        %v848 = vpow.pop %v847
        %v849 = vmul.f32 %v842, 1.442695
        %v850 = vpow.pop %v849
        %v851 = vadd.f32 %v820, %v832
        %v852 = vadd.f32 %v822, %v834
        %v853 = vadd.f32 %v824, %v836
        %v854 = vadd.f32 %v826, %v838
        %v855 = vadd.f32 %v851, %v844
        %v856 = vadd.f32 %v852, %v846
        %v857 = vadd.f32 %v853, %v848
        %v858 = vadd.f32 %v854, %v850
        %v859 = vrcp.pop %v855
        %v860 = vrcp.pop %v856
        %v861 = vrcp.pop %v857
        %v862 = vrcp.pop %v858
        %v863 = vmul.f32 %v820, %v859
        %v864 = vmul.f32 %v822, %v860
        %v865 = vmul.f32 %v824, %v861
        %v866 = vmul.f32 %v826, %v862
        %v867 = vsel %vm526, %v863, 0.0
        %v868 = vsel %vm527, %v864, 0.0
        %v869 = vsel %vm526, %v865, 0.0
        %v870 = vsel %vm527, %v866, 0.0
        %875 = vrot.lane.b32.xlu0 %v599, 64
        %v876 = vpop.permute.xlu0 %875
        %877 = vrot.lane.b32.xlu0 %v602, 64
        %v878 = vpop.permute.xlu0 %877
        %879 = vrot.lane.b32.xlu0 %v607, 64
        %v880 = vpop.permute.xlu0 %879
        %881 = vrot.lane.b32.xlu0 %v610, 64
        %v882 = vpop.permute.xlu0 %881
        %v887 = vrot.slane %v876, 6
        %v888 = vrot.slane %v878, 6
        %v889 = vrot.slane %v880, 6
        %v890 = vrot.slane %v882, 6
        %v891 = vsel %vm701, %v889, %v890
        %v892 = vsel %vm701, %v888, %v889
        %v893 = vsel %vm701, %v887, %v888
        %v894 = vsel %vm701, %v890, %v887
        %v895 = vmul.f32 %v867, %v894
        %v896 = vmul.f32 %v868, %v893
        %v897 = vmul.f32 %v869, %v892
        %v898 = vmul.f32 %v870, %v891
        %v899 = vmul.f32 %v832, %v859
        %v900 = vmul.f32 %v834, %v860
        %v901 = vmul.f32 %v836, %v861
        %v902 = vmul.f32 %v838, %v862
        %v903 = vmul.f32 %v899, %v599
        %v904 = vmul.f32 %v900, %v602
        %v905 = vmul.f32 %v901, %v607
        %v906 = vmul.f32 %v902, %v610
        %911 = vrot.lane.b32.xlu0 %v903, 64
        %v912 = vpop.permute.xlu0 %911
        %913 = vrot.lane.b32.xlu0 %v904, 64
        %v914 = vpop.permute.xlu0 %913
        %915 = vrot.lane.b32.xlu0 %v905, 64
        %v916 = vpop.permute.xlu0 %915
        %917 = vrot.lane.b32.xlu0 %v906, 64
        %v918 = vpop.permute.xlu0 %917
        %v923 = vadd.f32 %v895, %v912
        %v924 = vadd.f32 %v896, %v914
        %v925 = vadd.f32 %v897, %v916
        %v926 = vadd.f32 %v898, %v918
        %v927 = vmul.f32 %v844, %v859
        %v928 = vmul.f32 %v846, %v860
        %v929 = vmul.f32 %v848, %v861
        %v930 = vmul.f32 %v850, %v862
        %v931 = vsel %vm532, %v927, 0.0
        %v932 = vsel %vm533, %v928, 0.0
        %v933 = vsel %vm532, %v929, 0.0
        %v934 = vsel %vm533, %v930, 0.0
        %v935 = vrot.slane %v876, 2
        %v936 = vrot.slane %v878, 2
        %v937 = vrot.slane %v880, 2
        %v938 = vrot.slane %v882, 2
        %v939 = vsel %vm768, %v937, %v938
        %v940 = vsel %vm768, %v936, %v937
        %v941 = vsel %vm768, %v935, %v936
        %v942 = vsel %vm768, %v938, %v935
        %v943 = vmul.f32 %v931, %v941
        %v944 = vmul.f32 %v932, %v940
        %v945 = vmul.f32 %v933, %v939
        %v946 = vmul.f32 %v934, %v942
        %v947 = vadd.f32 %v923, %v943
        %v948 = vadd.f32 %v924, %v944
        %v949 = vadd.f32 %v925, %v945
        %v950 = vadd.f32 %v926, %v946
        %v951 = vrot.slane %v507, 6
        %v952 = vrot.slane %v508, 6
        %v953 = vrot.slane %v509, 6
        %v954 = vrot.slane %v510, 6
        %v955 = vsel %vm701, %v953, %v954
        %v956 = vsel %vm701, %v952, %v953
        %v957 = vsel %vm701, %v951, %v952
        %v958 = vsel %vm701, %v954, %v951
        %v959 = vsel %vm708, %v958, 0.0
        %v960 = vsel %vm709, %v957, 0.0
        %v961 = vsel %vm708, %v956, 0.0
        %v962 = vsel %vm709, %v955, 0.0
        %v963 = vpack.c.bf16 %v960, %v959
        %v964 = vpack.c.bf16 %v962, %v961
        %v965 = vrot.slane %v507, 2
        %v966 = vrot.slane %v508, 2
        %v967 = vrot.slane %v509, 2
        %v968 = vrot.slane %v510, 2
        %v969 = vsel %vm768, %v967, %v968
        %v970 = vsel %vm768, %v966, %v967
        %v971 = vsel %vm768, %v965, %v966
        %v972 = vsel %vm768, %v968, %v965
        %v973 = vsel %vm775, %v971, 0.0
        %v974 = vsel %vm776, %v970, 0.0
        %v975 = vsel %vm775, %v969, 0.0
        %v976 = vsel %vm776, %v972, 0.0
        %v977 = vpack.c.bf16 %v974, %v973
        %v978 = vpack.c.bf16 %v976, %v975
        %981 = vrot.lane.b32.xlu0 %v515, 32
        %v982 = vpop.permute.xlu0 %981
        %983 = vrot.lane.b32.xlu0 %v516, 32
        %v984 = vpop.permute.xlu0 %983
        %987 = vrot.lane.b32.xlu0 %v977, 64
        %v988 = vpop.permute.xlu0 %987
        %989 = vrot.lane.b32.xlu0 %v978, 64
        %v990 = vpop.permute.xlu0 %989
        %v993 = vsel %vm557, %v963, %v982
        %v996 = vsel %vm557, %v964, %v984
        %vm997 = vcmask 523264
        %v999 = vsel %vm997, %v993, %v988
        %v1001 = vsel %vm997, %v996, %v990
        %v1002 = vld [vmem:[#allocation10] sm:$0xf]
        %v1003 = vld [vmem:[#allocation10 + $0x4] sm:$0xf]
        %v1004 = vld [vmem:[#allocation10 + $0x8] sm:$0xf]
        %v1005 = vld [vmem:[#allocation10 + $0xc] sm:$0xf]
        %v1006 = vld [vmem:[#allocation10 + $0x10] sm:$0xf]
        %v1007 = vld [vmem:[#allocation10 + $0x14] sm:$0xf]
        %v1008 = vld [vmem:[#allocation10 + $0x18] sm:$0xf]
        %v1009 = vld [vmem:[#allocation10 + $0x1c] sm:$0xf]
        %v1010 = vld [vmem:[#allocation10 + $0x20] sm:$0xf]
        %v1011 = vld [vmem:[#allocation10 + $0x24] sm:$0xf]
        %v1012 = vld [vmem:[#allocation10 + $0x28] sm:$0xf]
        %v1013 = vld [vmem:[#allocation10 + $0x2c] sm:$0xf]
        %v1014 = vld [vmem:[%s6] sm:$0x1]
        %v1016 = vlaneseq
        %v1017 = vshrl.u32 %v1016, 7
        %v1018 = vsub.s32 0, %v1017
        %v1019 = vrot.slane %v1014, %v1018
        %v1033 = vunpack.c.l.b16 %v1002
        %v1034 = vunpack.c.l.b16 %v1003
        %v1035 = vunpack.c.l.b16 %v1004
        %v1036 = vunpack.c.l.b16 %v1005
        %v1037 = vunpack.c.l.b16 %v1006
        %v1038 = vunpack.c.l.b16 %v1007
        %v1039 = vunpack.c.l.b16 %v1008
        %v1040 = vunpack.c.l.b16 %v1009
        %v1041 = vunpack.c.l.b16 %v1010
        %v1042 = vunpack.c.l.b16 %v1011
        %v1043 = vunpack.c.l.b16 %v1012
        %v1044 = vunpack.c.l.b16 %v1013
        %v1045 = vpack.c.b16 %v1034, %v1033
        %v1046 = vpack.c.b16 %v1036, %v1035
        %v1047 = vpack.c.b16 %v1038, %v1037
        %v1048 = vpack.c.b16 %v1040, %v1039
        %v1049 = vpack.c.b16 %v1042, %v1041
        %v1050 = vpack.c.b16 %v1044, %v1043
        %vm1057 = vcmask 785408
        %v1058 = vsel %vm1057, %v999, 0
        %v1060 = vsel %vm1057, %v1001, 0
        %1062 = vmatprep.subr.bf16.mxu0 0
        %1063 = vmatpush1.bf16.msra.mxu0 %v1045
        %1064 = vmatprep.subr.bf16.mxu0 0
        %1065 = vmatpush1.bf16.msra.mxu0 %v1046
        %1066 = vmatprep.subr.bf16.mxu0 0
        %1067 = vmatpush1.bf16.msra.mxu0 %v1047
        %1068 = vmatprep.subr.bf16.mxu0 0
        %1069 = vmatpush1.bf16.msra.mxu0 %v1048
        %1070 = vmatprep.subr.bf16.mxu0 0
        %1071 = vmatpush1.bf16.msra.mxu0 %v1049
        %1072 = vmatprep.subr.bf16.mxu0 0
        %1073 = vmatpush1.bf16.msra.mxu0 %v1050
        %1074 = vmatprep.subr.bf16.mxu0 0
        %1075 = vmatpush1.bf16.msra.mxu0 0
        %1076 = vmatprep.subr.bf16.mxu0 0
        %1077 = vmatpush1.bf16.msra.mxu0 0
        %1078 = vmatprep.subr.bf16.mxu0 0
        %1079 = vmatpush1.bf16.msra.mxu0 0
        %1080 = vmatprep.subr.bf16.mxu0 0
        %1081 = vmatpush1.bf16.msra.mxu0 0
        %1082 = vmatprep.subr.bf16.mxu0 0
        %1083 = vmatpush1.bf16.msra.mxu0 0
        %1084 = vmatprep.subr.bf16.mxu0 0
        %1085 = vmatpush1.bf16.msra.mxu0 0
        %1086 = vmatprep.subr.bf16.mxu0 0
        %1087 = vmatpush1.bf16.msra.mxu0 0
        %1088 = vmatprep.subr.bf16.mxu0 0
        %1089 = vmatpush1.bf16.msra.mxu0 0
        %1090 = vmatprep.subr.bf16.mxu0 0
        %1091 = vmatpush1.bf16.msra.mxu0 0
        %1092 = vmatprep.subr.bf16.mxu0 0
        %1093 = vmatpush1.bf16.msra.mxu0 0
        %1094 = vmatprep.mubr.bf16.mxu0 0
        %1095 = vmatmul.mubr.bf16.gmra.mrb[0].mxu0 %v1058
        %v1096 = vpop.f32.mrb[0].mxu0
        %v1097 = vadd.f32 %v1019, %v1096
        %v1098 = vpop.f32.mrb[0].mxu0
        %v1099 = vpop.f32.mrb[0].mxu0
        %v1100 = vadd.f32 %v1019, %v1099
        %v1101 = vpop.f32.mrb[0].mxu0
        %1102 = vmatprep.mubr.bf16.mxu0 0
        %1103 = vmatmul.mubr.bf16.gmra.mrb[0].mxu0 %v1060
        %v1104 = vpop.f32.mrb[0].mxu0
        %v1105 = vadd.f32 %v1019, %v1104
        %v1106 = vpop.f32.mrb[0].mxu0
        %v1107 = vpop.f32.mrb[0].mxu0
        %v1108 = vadd.f32 %v1019, %v1107
        %v1109 = vpop.f32.mrb[0].mxu0
        %1110 = vdwg.mxu0
        %v1111 = vadd.f32 %v1097, %v947
        %v1112 = vadd.f32 %v1100, %v948
        %v1113 = vadd.f32 %v1105, %v949
        %v1114 = vadd.f32 %v1108, %v950
        %v1115 = vsel %vm557, %v1111, 0.0
        %v1116 = vsel %vm557, %v1112, 0.0
        %v1117 = vadd.f32 %v1115, %v1116
        %v1118 = vrot.slane %v1117, 4
        %v1119 = vadd.f32 %v1117, %v1118
        %v1120 = vrot.slane %v1119, 2
        %v1121 = vadd.f32 %v1119, %v1120
        %v1122 = vrot.slane %v1121, 1
        %v1123 = vadd.f32 %v1121, %v1122
        %v1124 = vsel %vm557, %v1113, 0.0
        %v1125 = vsel %vm557, %v1114, 0.0
        %v1126 = vadd.f32 %v1124, %v1125
        %v1127 = vrot.slane %v1126, 4
        %v1128 = vadd.f32 %v1126, %v1127
        %v1129 = vrot.slane %v1128, 2
        %v1130 = vadd.f32 %v1128, %v1129
        %v1131 = vrot.slane %v1130, 1
        %v1132 = vadd.f32 %v1130, %v1131
        %v1133 = vrcp.pop 16.0
        %v1134 = vmul.f32 %v1123, %v1133
        %v1135 = vmul.f32 %v1132, %v1133
        %v1136 = vsub.f32 %v1111, %v1134
        %v1137 = vsub.f32 %v1112, %v1134
        %v1138 = vsub.f32 %v1113, %v1135
        %v1139 = vsub.f32 %v1114, %v1135
        %v1140 = vmul.f32 %v1136, %v1136
        %v1141 = vmul.f32 %v1137, %v1137
        %v1142 = vmul.f32 %v1138, %v1138
        %v1143 = vmul.f32 %v1139, %v1139
        %v1144 = vsel %vm557, %v1140, 0.0
        %v1145 = vsel %vm557, %v1141, 0.0
        %v1146 = vadd.f32 %v1144, %v1145
        %v1147 = vrot.slane %v1146, 4
        %v1148 = vadd.f32 %v1146, %v1147
        %v1149 = vrot.slane %v1148, 2
        %v1150 = vadd.f32 %v1148, %v1149
        %v1151 = vrot.slane %v1150, 1
        %v1152 = vadd.f32 %v1150, %v1151
        %v1153 = vsel %vm557, %v1142, 0.0
        %v1154 = vsel %vm557, %v1143, 0.0
        %v1155 = vadd.f32 %v1153, %v1154
        %v1156 = vrot.slane %v1155, 4
        %v1157 = vadd.f32 %v1155, %v1156
        %v1158 = vrot.slane %v1157, 2
        %v1159 = vadd.f32 %v1157, %v1158
        %v1160 = vrot.slane %v1159, 1
        %v1161 = vadd.f32 %v1159, %v1160
        %v1162 = vmul.f32 %v1152, %v1133
        %v1163 = vmul.f32 %v1161, %v1133
        %v1164 = vadd.f32 %v1162, 1e-05
        %v1165 = vadd.f32 %v1163, 1e-05
        %v1166 = vrsqrt.pop %v1164
        %v1167 = vrsqrt.pop %v1165
        %v1168 = vmul.f32 %v1136, %v1166
        %v1169 = vmul.f32 %v1137, %v1166
        %v1170 = vmul.f32 %v1138, %v1167
        %v1171 = vmul.f32 %v1139, %v1167
        %v1172 = vpack.c.bf16 %v1169, %v1168
        %v1173 = vpack.c.bf16 %v1171, %v1170
        %v1174 = vld [vmem:[%s7] sm:$0xf]
        %v1175 = vld [vmem:[%s7 + $0x4] sm:$0xf]
        %v1176 = vld [vmem:[%s7 + $0x8] sm:$0xf]
        %v1177 = vld [vmem:[%s7 + $0xc] sm:$0xf]
        %v1178 = vld [vmem:[#allocation11] sm:$0x1]
        %v1180 = vlaneseq
        %v1181 = vshrl.u32 %v1180, 7
        %v1182 = vsub.s32 0, %v1181
        %v1183 = vrot.slane %v1178, %v1182
        %v1189 = vunpack.c.l.b16 %v1174
        %v1190 = vunpack.c.l.b16 %v1175
        %v1191 = vunpack.c.l.b16 %v1176
        %v1192 = vunpack.c.l.b16 %v1177
        %v1193 = vpack.c.b16 %v1190, %v1189
        %v1194 = vpack.c.b16 %v1192, %v1191
        %v1198 = vsel %vm557, %v1172, 0
        %v1201 = vsel %vm557, %v1173, 0
        %1203 = vmatprep.subr.bf16.mxu0 0
        %1204 = vmatpush1.bf16.msra.mxu0 %v1193
        %1205 = vmatprep.subr.bf16.mxu0 0
        %1206 = vmatpush1.bf16.msra.mxu0 %v1194
        %1207 = vmatprep.subr.bf16.mxu0 0
        %1208 = vmatpush1.bf16.msra.mxu0 0
        %1209 = vmatprep.subr.bf16.mxu0 0
        %1210 = vmatpush1.bf16.msra.mxu0 0
        %1211 = vmatprep.subr.bf16.mxu0 0
        %1212 = vmatpush1.bf16.msra.mxu0 0
        %1213 = vmatprep.subr.bf16.mxu0 0
        %1214 = vmatpush1.bf16.msra.mxu0 0
        %1215 = vmatprep.subr.bf16.mxu0 0
        %1216 = vmatpush1.bf16.msra.mxu0 0
        %1217 = vmatprep.subr.bf16.mxu0 0
        %1218 = vmatpush1.bf16.msra.mxu0 0
        %1219 = vmatprep.subr.bf16.mxu0 0
        %1220 = vmatpush1.bf16.msra.mxu0 0
        %1221 = vmatprep.subr.bf16.mxu0 0
        %1222 = vmatpush1.bf16.msra.mxu0 0
        %1223 = vmatprep.subr.bf16.mxu0 0
        %1224 = vmatpush1.bf16.msra.mxu0 0
        %1225 = vmatprep.subr.bf16.mxu0 0
        %1226 = vmatpush1.bf16.msra.mxu0 0
        %1227 = vmatprep.subr.bf16.mxu0 0
        %1228 = vmatpush1.bf16.msra.mxu0 0
        %1229 = vmatprep.subr.bf16.mxu0 0
        %1230 = vmatpush1.bf16.msra.mxu0 0
        %1231 = vmatprep.subr.bf16.mxu0 0
        %1232 = vmatpush1.bf16.msra.mxu0 0
        %1233 = vmatprep.subr.bf16.mxu0 0
        %1234 = vmatpush1.bf16.msra.mxu0 0
        %1235 = vmatprep.mubr.bf16.mxu0 0
        %1236 = vmatmul.mubr.bf16.gmra.mrb[0].mxu0 %v1198
        %v1237 = vpop.f32.mrb[0].mxu0
        %v1238 = vadd.f32 %v1183, %v1237
        %v1239 = vpop.f32.mrb[0].mxu0
        %v1240 = vpop.f32.mrb[0].mxu0
        %v1241 = vadd.f32 %v1183, %v1240
        %v1242 = vpop.f32.mrb[0].mxu0
        %1243 = vmatprep.mubr.bf16.mxu0 0
        %1244 = vmatmul.mubr.bf16.gmra.mrb[0].mxu0 %v1201
        %v1245 = vpop.f32.mrb[0].mxu0
        %v1246 = vadd.f32 %v1183, %v1245
        %v1247 = vpop.f32.mrb[0].mxu0
        %v1248 = vpop.f32.mrb[0].mxu0
        %v1249 = vadd.f32 %v1183, %v1248
        %v1250 = vpop.f32.mrb[0].mxu0
        %1251 = vdwg.mxu0
        %v1252 = vmax.f32 %v1238, 0.0
        %v1253 = vmax.f32 %v1241, 0.0
        %v1254 = vmax.f32 %v1246, 0.0
        %v1255 = vmax.f32 %v1249, 0.0
        %v1256 = vpack.c.bf16 %v1253, %v1252
        %v1257 = vpack.c.bf16 %v1255, %v1254
        %v1258 = vld [vmem:[%s9] sm:$0xf]
        %v1259 = vld [vmem:[%s9 + $0x4] sm:$0xf]
        %v1260 = vld [vmem:[%s9 + $0x8] sm:$0xf]
        %v1261 = vld [vmem:[%s9 + $0xc] sm:$0xf]
        %v1262 = vld [vmem:[%s10] sm:$0x1]
        %v1264 = vlaneseq
        %v1265 = vshrl.u32 %v1264, 7
        %v1266 = vsub.s32 0, %v1265
        %v1267 = vrot.slane %v1262, %v1266
        %v1273 = vunpack.c.l.b16 %v1258
        %v1274 = vunpack.c.l.b16 %v1259
        %v1275 = vunpack.c.l.b16 %v1260
        %v1276 = vunpack.c.l.b16 %v1261
        %v1277 = vpack.c.b16 %v1274, %v1273
        %v1278 = vpack.c.b16 %v1276, %v1275
        %v1282 = vsel %vm557, %v1256, 0
        %v1285 = vsel %vm557, %v1257, 0
        %1287 = vmatprep.subr.bf16.mxu0 0
        %1288 = vmatpush1.bf16.msra.mxu0 %v1277
        %1289 = vmatprep.subr.bf16.mxu0 0
        %1290 = vmatpush1.bf16.msra.mxu0 %v1278
        %1291 = vmatprep.subr.bf16.mxu0 0
        %1292 = vmatpush1.bf16.msra.mxu0 0
        %1293 = vmatprep.subr.bf16.mxu0 0
        %1294 = vmatpush1.bf16.msra.mxu0 0
        %1295 = vmatprep.subr.bf16.mxu0 0
        %1296 = vmatpush1.bf16.msra.mxu0 0
        %1297 = vmatprep.subr.bf16.mxu0 0
        %1298 = vmatpush1.bf16.msra.mxu0 0
        %1299 = vmatprep.subr.bf16.mxu0 0
        %1300 = vmatpush1.bf16.msra.mxu0 0
        %1301 = vmatprep.subr.bf16.mxu0 0
        %1302 = vmatpush1.bf16.msra.mxu0 0
        %1303 = vmatprep.subr.bf16.mxu0 0
        %1304 = vmatpush1.bf16.msra.mxu0 0
        %1305 = vmatprep.subr.bf16.mxu0 0
        %1306 = vmatpush1.bf16.msra.mxu0 0
        %1307 = vmatprep.subr.bf16.mxu0 0
        %1308 = vmatpush1.bf16.msra.mxu0 0
        %1309 = vmatprep.subr.bf16.mxu0 0
        %1310 = vmatpush1.bf16.msra.mxu0 0
        %1311 = vmatprep.subr.bf16.mxu0 0
        %1312 = vmatpush1.bf16.msra.mxu0 0
        %1313 = vmatprep.subr.bf16.mxu0 0
        %1314 = vmatpush1.bf16.msra.mxu0 0
        %1315 = vmatprep.subr.bf16.mxu0 0
        %1316 = vmatpush1.bf16.msra.mxu0 0
        %1317 = vmatprep.subr.bf16.mxu0 0
        %1318 = vmatpush1.bf16.msra.mxu0 0
        %1319 = vmatprep.mubr.bf16.mxu0 0
        %1320 = vmatmul.mubr.bf16.gmra.mrb[0].mxu0 %v1282
        %v1321 = vpop.f32.mrb[0].mxu0
        %v1322 = vadd.f32 %v1267, %v1321
        %v1323 = vpop.f32.mrb[0].mxu0
        %v1324 = vpop.f32.mrb[0].mxu0
        %v1325 = vadd.f32 %v1267, %v1324
        %v1326 = vpop.f32.mrb[0].mxu0
        %1327 = vmatprep.mubr.bf16.mxu0 0
        %1328 = vmatmul.mubr.bf16.gmra.mrb[0].mxu0 %v1285
        %v1329 = vpop.f32.mrb[0].mxu0
        %v1330 = vadd.f32 %v1267, %v1329
        %v1331 = vpop.f32.mrb[0].mxu0
        %v1332 = vpop.f32.mrb[0].mxu0
        %v1333 = vadd.f32 %v1267, %v1332
        %v1334 = vpop.f32.mrb[0].mxu0
        %1335 = vdwg.mxu0
        %v1336 = vadd.f32 %v507, %v1322
        %v1337 = vadd.f32 %v508, %v1325
        %v1338 = vadd.f32 %v509, %v1330
        %v1339 = vadd.f32 %v510, %v1333
        %1340 = vst.msk [vmem:[%s502] sm:$0xff] %vm557, %v1336
        %1341 = vst.msk [vmem:[%s502 + $0x8] sm:$0xff] %vm557, %v1337
        %1342 = vst.msk [vmem:[%s502 + $0x10] sm:$0xff] %vm557, %v1338
        %1343 = vst.msk [vmem:[%s502 + $0x18] sm:$0xff] %vm557, %v1339
        %s1344 = sand.u32 %s282, 1
        %s1345 = scalar_lea.sflag [#allocation4], %s1344
        %s1346 = sand.u32 %s282, 1
        %s1347 = smul.addr %s1346, 32
        %s1348 = scalar_lea.vmem [#allocation13], %s1347
        // Predicated region
        $region89: #{tpu_custom_call.1} parent=63 // pred_check
          %p1349 = pneg %p292
        $region90: #{tpu_custom_call.1} parent=63 // pred_check_branch
          %1351 = sbr.rel (%p1349) target = $region92
        $region91: #{tpu_custom_call.1} parent=63 // pred_region
          %s1352 = smul.u32 2, %s33
          %s1354 = ssub.s32 512, 512
          %1355 = vsyncadd %s1345, %s1354
          %s1356 = smul.addr %s1352, 2
          %s1357 = smul.addr %s1356, 128
          %s1358 = scalar_lea.hbm %s11, %s1357
          %s1359 = sshll.u32 %s1348, 4
          %s1360 = int_to_ptr.vmem [resolvable:$true] %s1359
          %1365 = dma.vmem_to_hbm [thread:$0]  %s1360, 512, %s1358, %s1345, 128, 128, 8
        $region92: #{tpu_custom_call.1} parent=63 // pred_fallthru
          _
      $region64: #{tpu_custom_call.1} parent=5 // pred_fallthru
        _
      %p1366 = scmp.le.s32.totalorder 2, %s28
      // Predicated region
      $region93: #{tpu_custom_call.1} parent=5 // pred_check
        %p1367 = pneg %p1366
      $region94: #{tpu_custom_call.1} parent=5 // pred_check_branch
        %1369 = sbr.rel (%p1367) target = $region96
      $region95: #{tpu_custom_call.1} parent=5 // pred_region
        %s1370 = ssub.s32 %s28, 2
        // Predicated region
        $region97: #{tpu_custom_call.1} parent=95 // pred_check
          %p1371 = pneg %p298
        $region98: #{tpu_custom_call.1} parent=95 // pred_check_branch
          %1373 = sbr.rel (%p1371) target = $region100
        $region99: #{tpu_custom_call.1} parent=95 // pred_region
          %s1374 = sand.u32 %s283, 1
          %s1375 = scalar_lea.sflag [#allocation4], %s1374
          %s1376 = sand.u32 %s283, 1
          %s1377 = smul.addr %s1376, 32
          %s1378 = scalar_lea.vmem [#allocation13], %s1377
          %1379 = dma.done %s1375, 512
        $region100: #{tpu_custom_call.1} parent=95 // pred_fallthru
          _
      $region96: #{tpu_custom_call.1} parent=5 // pred_fallthru
        _
    $region6: #{tpu_custom_call.1} parent=1 // loop_footer
      %s32 = sadd.s32 1, %s28
    $region7: #{tpu_custom_call.1} parent=1 // loop_footer_branch
      %27 = sbr.rel target = $region3
    $region8: #{tpu_custom_call.1} parent=1 // loop_exit
      _
    %1380 = vsyncpa [#allocation3], 1
    %s1381 = scalar_lea.sflag [#allocation3], 1
    %1382 = vsyncpa %s1381, 1
    %1383 = vsyncpa [#allocation6], 1
    %s1384 = scalar_lea.sflag [#allocation6], 1
    %1385 = vsyncpa %s1384, 1
    %1386 = vsyncpa [#allocation9], 1
    %1387 = vsyncpa [#allocation12], 1
    %1388 = vsyncpa [#allocation4], 1
    %s1389 = scalar_lea.sflag [#allocation4], 1
    %1390 = vsyncpa %s1389, 1

</llo_original>
